<compile_context>
chip_gen: v6e
topology: v6e:2x2x1
jax: 0.10.0
libtpu: 0.0.40
codegen_flags: <defaults>
</compile_context>

<pallas_src>
from itertools import product

import numpy as np
import jax
import jax.numpy as jnp
from jax import lax
from jax.experimental import pallas as pl
from jax.experimental.pallas import tpu as pltpu


# ----------------------------------------------------------------------------
# Synthetic config (mirrors the globals the PyTorch module reads).
# ----------------------------------------------------------------------------
class Cfg:
    num_classes = 8
    mask_dim = 32
    embed_dim = 32
    use_sipmask = False
    extra_head_net = [(32, 3, {"padding": 1})]        # -> upfeature: conv3x3(32) + ReLU
    head_layer_params = [{"kernel_size": 3, "padding": 1}]
    extra_layers = (0, 0, 0)                          # conf / bbox-mask / track extras: identity
    train_centerness = True
    train_boxes = True
    train_class = True
    train_track = True
    use_dcn_class = False
    use_dcn_track = False
    use_dcn_mask = False
    use_yolo_regressors = False
    temporal_fusion_module = False


cfg = Cfg()

PRED_ASPECT_RATIOS = [[(1.0, 1.0)]]   # one AR so num_priors == len(pred_scales)
PRED_SCALES = [1.0, 0.5]              # num_priors = 2

NUM_PRIORS = len(PRED_SCALES)
NUM_CLASSES = cfg.num_classes
EMBED_DIM = cfg.embed_dim
MASK_DIM = cfg.mask_dim
HEAD_DIM = cfg.extra_head_net[0][0]   # 32

# Fused head channel layout (head-major; within each head the channel order is
# prior-major, exactly like the PyTorch Conv2d out_channels ordering):
#   [ track(P*E) | mask(P*M) | ctr(P) | bbox(P*4) | conf(P*C) | zero-pad ]
C_TRACK = NUM_PRIORS * EMBED_DIM      # 64
C_MASK = NUM_PRIORS * MASK_DIM        # 64
C_CTR = NUM_PRIORS                    # 2
C_BBOX = NUM_PRIORS * 4               # 8
C_CONF = NUM_PRIORS * NUM_CLASSES     # 16
TRACK_OFF = 0
MASK_OFF = TRACK_OFF + C_TRACK        # 64
CTR_OFF = MASK_OFF + C_MASK           # 128
BBOX_OFF = CTR_OFF + C_CTR            # 130
CONF_OFF = BBOX_OFF + C_BBOX          # 138
C_TOTAL = CONF_OFF + C_CONF           # 154
N_PAD = ((C_TOTAL + 127) // 128) * 128  # 256 -> lane-dense output, clean MXU tiles

# Set to jnp.bfloat16 on v6e/v7x for the fast MXU path (accumulation stays f32 via
# preferred_element_type). Kept f32 by default for numerical fidelity with the
# PyTorch reference (~1e-2 rel. error in bf16).
MATMUL_DTYPE = jnp.float32


# ----------------------------------------------------------------------------
# Pallas kernels: batched matmul + bias (+ fused epilogue), one batch per grid step.
# ----------------------------------------------------------------------------
def _matmul_bias_relu_kernel(x_ref, w_ref, b_ref, o_ref):
    # x_ref: (1, R, K), w_ref: (K, N), b_ref: (1, N), o_ref: (1, R, N)
    acc = jnp.dot(x_ref[0], w_ref[...], preferred_element_type=jnp.float32)
    acc = jnp.maximum(acc + b_ref[...], 0.0)
    o_ref[0] = acc.astype(o_ref.dtype)


def _fused_heads_kernel(x_ref, w_ref, b_ref, o_ref):
    # One matmul (K = 9*HEAD_DIM = 288, N = 256) covering all five heads.
    acc = jnp.dot(x_ref[0], w_ref[...], preferred_element_type=jnp.float32)
    acc = acc + b_ref[...]

    # Fused F.normalize(track, dim=-1) epilogue: L2-normalize each prior's
    # EMBED_DIM-lane group in the track block; every other lane is scaled by 1.
    # Lane-masked full-width reduce avoids sub-128-lane slices; rsqrt goes to EUP.
    lane = lax.broadcasted_iota(jnp.int32, acc.shape, 1)
    sq = acc * acc
    scale = jnp.float32(1.0)
    for p in range(NUM_PRIORS):
        lo = TRACK_OFF + p * EMBED_DIM
        hi = lo + EMBED_DIM
        grp = (lane >= lo) & (lane < hi)
        ssum = jnp.sum(jnp.where(grp, sq, 0.0), axis=-1, keepdims=True)
        inv = lax.rsqrt(jnp.maximum(ssum, jnp.float32(1e-24)))  # == 1/max(||v||, 1e-12)
        scale = jnp.where(grp, inv, scale)

    o_ref[0] = (acc * scale).astype(o_ref.dtype)


def _batched_matmul(kernel, xcol, w, b, n_out):
    """xcol: (B, R, K); w: (K, n_out); b: (1, n_out) -> (B, R, n_out) f32."""
    B, R, K = xcol.shape
    return pl.pallas_call(
        kernel,
        out_shape=jax.ShapeDtypeStruct((B, R, n_out), jnp.float32),
        grid=(B,),
        in_specs=[
            pl.BlockSpec((1, R, K), lambda bi: (bi, 0, 0)),
            pl.BlockSpec((K, n_out), lambda bi: (0, 0)),
            pl.BlockSpec((1, n_out), lambda bi: (0, 0)),
        ],
        out_specs=pl.BlockSpec((1, R, n_out), lambda bi: (bi, 0, 0)),
        compiler_params=pltpu.CompilerParams(dimension_semantics=("parallel",)),
    )(xcol, w, b)


# ----------------------------------------------------------------------------
# Wrapper-side im2col for 3x3 "same" conv (runs under jit as cheap XLA ops).
# Row r corresponds to spatial (h, w) in row-major; column layout is
# (dy, dx, cin) -> matches w.reshape(9*Cin, Cout).
# ----------------------------------------------------------------------------
def _im2col_3x3(x_nhwc):
    B, H, W, C = x_nhwc.shape
    xp = jnp.pad(x_nhwc, ((0, 0), (1, 1), (1, 1), (0, 0)))
    taps = [xp[:, dy:dy + H, dx:dx + W, :] for dy in range(3) for dx in range(3)]
    return jnp.concatenate(taps, axis=-1).reshape(B, H * W, 9 * C)


# ----------------------------------------------------------------------------
# Prior boxes (plain-Python glue, identical math to make_priors). Runs at trace
# time (H, W static under jit) -> becomes a folded constant.
# ----------------------------------------------------------------------------
def make_priors(conv_h, conv_w, pred_aspect_ratios, pred_scales):
    prior_data = []
    for j, i in product(range(conv_h), range(conv_w)):
        x = (i + 0.5) / conv_w
        y = (j + 0.5) / conv_h
        for ars in pred_aspect_ratios:
            for ar in ars:
                for scale in pred_scales:
                    arh, arw = ar
                    ratio = scale / pred_scales[0]
                    w = ratio * arw / conv_w
                    h = ratio * arh / conv_h
                    prior_data += [x, y, w, h]
    return jnp.asarray(np.array(prior_data, dtype=np.float32).reshape(1, -1, 4))


# ----------------------------------------------------------------------------
# Parameters (deterministic synthetic init, per-head like the PyTorch module),
# plus one-time packing into the fused / matmul-ready layout.
# ----------------------------------------------------------------------------
def init_params(key, in_channels):
    shapes = {
        "up": (in_channels, HEAD_DIM),     # upfeature conv
        "ctr": (HEAD_DIM, C_CTR),          # centerness_layer[0]
        "bbox": (HEAD_DIM, C_BBOX),        # bbox_layer[0]
        "conf": (HEAD_DIM, C_CONF),        # conf_layer[0]
        "track": (HEAD_DIM, C_TRACK),      # track_layer[0]
        "mask": (HEAD_DIM, C_MASK),        # mask_layer[0]
    }
    params = {}
    keys = jax.random.split(key, len(shapes))
    for k, (name, (cin, cout)) in zip(keys, shapes.items()):
        kw, kb = jax.random.split(k)
        params[name + "_w"] = 0.05 * jax.random.normal(kw, (3, 3, cin, cout), jnp.float32)
        params[name + "_b"] = 0.01 * jax.random.normal(kb, (cout,), jnp.float32)
    return params


def pack_params(params):
    """Pack per-head conv weights into the fused, matmul-ready layout (done once)."""
    head_order = ["track", "mask", "ctr", "bbox", "conf"]   # must match *_OFF constants
    hw = jnp.concatenate([params[h + "_w"] for h in head_order], axis=-1)  # (3,3,HEAD_DIM,154)
    hb = jnp.concatenate([params[h + "_b"] for h in head_order], axis=-1)  # (154,)
    hw = jnp.pad(hw, ((0, 0), (0, 0), (0, 0), (0, N_PAD - C_TOTAL)))
    hb = jnp.pad(hb, ((0, N_PAD - C_TOTAL),))
    return {
        "up_w": params["up_w"].reshape(-1, HEAD_DIM),       # (9*Cin, 32)
        "up_b": params["up_b"].reshape(1, HEAD_DIM),
        "head_w": hw.reshape(-1, N_PAD),                    # (9*HEAD_DIM, 256)
        "head_b": hb.reshape(1, N_PAD),
    }


# ----------------------------------------------------------------------------
# Forward pass (mirrors PredictionModule_FC.forward under the cfg above).
# ----------------------------------------------------------------------------
def _forward(packed, x_nchw):
    B, _, H, W = x_nchw.shape
    HW = H * W
    n = HW * NUM_PRIORS

    # NCHW -> NHWC so channels sit on the lane axis.
    x = jnp.transpose(x_nchw, (0, 2, 3, 1)).astype(jnp.float32)

    # upfeature: conv3x3(HEAD_DIM) + ReLU as one matmul (K = 9*Cin).
    # NOTE: 32-lane intermediate output is unavoidable (head weights have Cin=32);
    # it is tiny (B*HW*32 f32) and only written/read once.
    xcol = _im2col_3x3(x).astype(MATMUL_DTYPE)
    feat = _batched_matmul(_matmul_bias_relu_kernel, xcol,
                           packed["up_w"].astype(MATMUL_DTYPE), packed["up_b"], HEAD_DIM)

    # extra_layers == (0,0,0) -> conf/bbox/mask/track extras are identity on `feat`.

    # All five heads fused: one matmul (K = 9*HEAD_DIM = 288, N = 256) per batch,
    # with the track L2-normalize fused in the kernel epilogue.
    featcol = _im2col_3x3(feat.reshape(B, H, W, HEAD_DIM)).astype(MATMUL_DTYPE)
    out = _batched_matmul(_fused_heads_kernel, featcol,
                          packed["head_w"].astype(MATMUL_DTYPE), packed["head_b"], N_PAD)

    # Wrapper-side slicing / views (channel order matches the per-head Conv2d layout:
    # prior-major within each head, so reshape(..., n, dim) matches the torch .view()).
    track = out[:, :, TRACK_OFF:TRACK_OFF + C_TRACK].reshape(B, n, EMBED_DIM)   # already unit-norm
    mask = out[:, :, MASK_OFF:MASK_OFF + C_MASK].reshape(B, n, MASK_DIM)
    centerness = jnp.tanh(out[:, :, CTR_OFF:CTR_OFF + C_CTR]).reshape(B, n, 1)
    loc = out[:, :, BBOX_OFF:BBOX_OFF + C_BBOX].reshape(B, n, 4)
    conf = out[:, :, CONF_OFF:CONF_OFF + C_CONF].reshape(B, n, NUM_CLASSES)

    priors = make_priors(H, W, PRED_ASPECT_RATIOS, PRED_SCALES)   # trace-time constant

    return {
        "mask_coeff": mask,
        "priors": priors,
        "loc": loc,
        "centerness": centerness,
        "conf": conf,
        "track": track,
    }


prediction_module_fc_forward = jax.jit(_forward)


if __name__ == "__main__":
    key = jax.random.PRNGKey(0)
    k_param, k_x = jax.random.split(key)

    B, C, H, W = 2, 16, 16, 16
    x = jax.random.normal(k_x, (B, C, H, W), dtype=jnp.float32)   # NCHW, as in PyTorch
    params = init_params(k_param, C)
    packed = pack_params(params)

    preds = prediction_module_fc_forward(packed, x)
    preds = jax.block_until_ready(preds)

    n = H * W * NUM_PRIORS
    assert preds["loc"].shape == (B, n, 4)
    assert preds["centerness"].shape == (B, n, 1)
    assert preds["conf"].shape == (B, n, NUM_CLASSES)
    assert preds["mask_coeff"].shape == (B, n, MASK_DIM)
    assert preds["track"].shape == (B, n, EMBED_DIM)
    assert preds["priors"].shape == (1, n, 4)
    assert bool(jnp.all(jnp.isfinite(preds["loc"])))
    assert bool(jnp.all(jnp.abs(preds["centerness"]) <= 1.0))
    # track embeddings are unit-norm after the fused F.normalize-equivalent epilogue
    assert bool(jnp.allclose(jnp.linalg.norm(preds["track"], axis=-1), 1.0, atol=1e-4))

    print("KERNEL_OK")
</pallas_src>

<mosaic_0001>
module attributes {stable_mosaic.version = 11 : i64} {
  func.func @_matmul_bias_relu_kernel(%arg0: i32, %arg1: memref<1x256x144xf32, #tpu.memory_space<vmem>>, %arg2: memref<144x32xf32, #tpu.memory_space<vmem>>, %arg3: memref<1x32xf32, #tpu.memory_space<vmem>>, %arg4: memref<1x256x32xf32, #tpu.memory_space<vmem>>) attributes {dimension_semantics = [#tpu.dimension_semantics<parallel>], iteration_bounds = array<i64: 2>, scalar_prefetch = 0 : i64, scratch_operands = 0 : i64, tpu.core_type = #tpu.core_type<tc>, window_params = [{transform_indices = @transform_0, window_bounds = array<i64: 1, 256, 144>}, {pipeline_mode = #tpu.pipeline_mode<synchronous>, transform_indices = @transform_1, window_bounds = array<i64: 144, 32>}, {pipeline_mode = #tpu.pipeline_mode<synchronous>, transform_indices = @transform_2, window_bounds = array<i64: 1, 32>}, {transform_indices = @transform_3, window_bounds = array<i64: 1, 256, 32>}]} {
    %c0 = arith.constant 0 : index
    %c0_0 = arith.constant 0 : index
    %c0_1 = arith.constant 0 : index
    %0 = vector.load %arg1[%c0, %c0_0, %c0_1] : memref<1x256x144xf32, #tpu.memory_space<vmem>>, vector<1x256x144xf32>
    %1 = vector.shape_cast %0 : vector<1x256x144xf32> to vector<256x144xf32>
    %c0_2 = arith.constant 0 : index
    %c0_3 = arith.constant 0 : index
    %2 = vector.load %arg2[%c0_2, %c0_3] : memref<144x32xf32, #tpu.memory_space<vmem>>, vector<144x32xf32>
    %cst = arith.constant dense<0.000000e+00> : vector<256x32xf32>
    %3 = tpu.matmul %1, %2, %cst {dimension_numbers = #tpu.dot_dimension_numbers<[1], [0], [0], [1], [0, 0, 1, 1], [], []>} : vector<256x144xf32>, vector<144x32xf32>, vector<256x32xf32> -> vector<256x32xf32>
    %c0_4 = arith.constant 0 : index
    %c0_5 = arith.constant 0 : index
    %4 = vector.load %arg3[%c0_4, %c0_5] : memref<1x32xf32, #tpu.memory_space<vmem>>, vector<1x32xf32>
    %5 = vector.broadcast %4 : vector<1x32xf32> to vector<256x32xf32>
    %6 = arith.addf %3, %5 : vector<256x32xf32>
    %cst_6 = arith.constant 0.000000e+00 : f32
    %7 = vector.broadcast %cst_6 : f32 to vector<256x32xf32>
    %8 = arith.maximumf %6, %7 : vector<256x32xf32>
    %c0_7 = arith.constant 0 : index
    %c0_8 = arith.constant 0 : index
    %c0_9 = arith.constant 0 : index
    %9 = vector.load %arg4[%c0_7, %c0_8, %c0_9] : memref<1x256x32xf32, #tpu.memory_space<vmem>>, vector<1x256x32xf32>
    %10 = vector.shape_cast %9 : vector<1x256x32xf32> to vector<256x32xf32>
    %11 = vector.shape_cast %8 : vector<256x32xf32> to vector<1x256x32xf32>
    tpu.vector_store %arg4[%c0_7, %c0_8, %c0_9], %11 {strides = array<i32>} : memref<1x256x32xf32, #tpu.memory_space<vmem>>, vector<1x256x32xf32>,
    return
  }
  func.func @transform_0(%arg0: i32) -> (i32, i32, i32) {
    %c0_i32 = arith.constant 0 : i32
    %c0_i32_0 = arith.constant 0 : i32
    %c0_i32_1 = arith.constant 0 : i32
    return %arg0, %c0_i32, %c0_i32_0 : i32, i32, i32
  }
  func.func @transform_1(%arg0: i32) -> (i32, i32) {
    %c0_i32 = arith.constant 0 : i32
    %c0_i32_0 = arith.constant 0 : i32
    %c0_i32_1 = arith.constant 0 : i32
    return %c0_i32, %c0_i32_0 : i32, i32
  }
  func.func @transform_2(%arg0: i32) -> (i32, i32) {
    %c0_i32 = arith.constant 0 : i32
    %c0_i32_0 = arith.constant 0 : i32
    %c0_i32_1 = arith.constant 0 : i32
    return %c0_i32, %c0_i32_0 : i32, i32
  }
  func.func @transform_3(%arg0: i32) -> (i32, i32, i32) {
    %c0_i32 = arith.constant 0 : i32
    %c0_i32_0 = arith.constant 0 : i32
    %c0_i32_1 = arith.constant 0 : i32
    return %arg0, %c0_i32, %c0_i32_0 : i32, i32, i32
  }
}

module attributes {stable_mosaic.version = 11 : i64} {
  func.func @_fused_heads_kernel(%arg0: i32, %arg1: memref<1x256x288xf32, #tpu.memory_space<vmem>>, %arg2: memref<288x256xf32, #tpu.memory_space<vmem>>, %arg3: memref<1x256xf32, #tpu.memory_space<vmem>>, %arg4: memref<1x256x256xf32, #tpu.memory_space<vmem>>) attributes {dimension_semantics = [#tpu.dimension_semantics<parallel>], iteration_bounds = array<i64: 2>, scalar_prefetch = 0 : i64, scratch_operands = 0 : i64, tpu.core_type = #tpu.core_type<tc>, window_params = [{transform_indices = @transform_0, window_bounds = array<i64: 1, 256, 288>}, {pipeline_mode = #tpu.pipeline_mode<synchronous>, transform_indices = @transform_1, window_bounds = array<i64: 288, 256>}, {pipeline_mode = #tpu.pipeline_mode<synchronous>, transform_indices = @transform_2, window_bounds = array<i64: 1, 256>}, {transform_indices = @transform_3, window_bounds = array<i64: 1, 256, 256>}]} {
    %c0 = arith.constant 0 : index
    %c0_0 = arith.constant 0 : index
    %c0_1 = arith.constant 0 : index
    %0 = vector.load %arg1[%c0, %c0_0, %c0_1] : memref<1x256x288xf32, #tpu.memory_space<vmem>>, vector<1x256x288xf32>
    %1 = vector.shape_cast %0 : vector<1x256x288xf32> to vector<256x288xf32>
    %c0_2 = arith.constant 0 : index
    %c0_3 = arith.constant 0 : index
    %2 = vector.load %arg2[%c0_2, %c0_3] : memref<288x256xf32, #tpu.memory_space<vmem>>, vector<288x256xf32>
    %cst = arith.constant dense<0.000000e+00> : vector<256x256xf32>
    %3 = tpu.matmul %1, %2, %cst {dimension_numbers = #tpu.dot_dimension_numbers<[1], [0], [0], [1], [0, 0, 1, 1], [], []>} : vector<256x288xf32>, vector<288x256xf32>, vector<256x256xf32> -> vector<256x256xf32>
    %c0_4 = arith.constant 0 : index
    %c0_5 = arith.constant 0 : index
    %4 = vector.load %arg3[%c0_4, %c0_5] : memref<1x256xf32, #tpu.memory_space<vmem>>, vector<1x256xf32>
    %5 = vector.broadcast %4 : vector<1x256xf32> to vector<256x256xf32>
    %6 = arith.addf %3, %5 : vector<256x256xf32>
    %7 = tpu.iota {dimensions = array<i32: 1>} : vector<256x256xi32>
    %8 = arith.mulf %6, %6 : vector<256x256xf32>
    %c0_i32 = arith.constant 0 : i32
    %9 = vector.broadcast %c0_i32 : i32 to vector<256x256xi32>
    %10 = arith.cmpi sge, %7, %9 : vector<256x256xi32>
    %c32_i32 = arith.constant 32 : i32
    %11 = vector.broadcast %c32_i32 : i32 to vector<256x256xi32>
    %12 = arith.cmpi slt, %7, %11 : vector<256x256xi32>
    %13 = arith.andi %10, %12 : vector<256x256xi1>
    %cst_6 = arith.constant 0.000000e+00 : f32
    %14 = vector.broadcast %cst_6 : f32 to vector<256x256xf32>
    %15 = arith.select %13, %8, %14 : vector<256x256xi1>, vector<256x256xf32>
    %cst_7 = arith.constant dense<0.000000e+00> : vector<256xf32>
    %16 = vector.multi_reduction <add>, %15, %cst_7 [1] : vector<256x256xf32> to vector<256xf32>
    %17 = vector.shape_cast %16 : vector<256xf32> to vector<256x1xf32>
    %cst_8 = arith.constant 1.000000e-24 : f32
    %18 = vector.broadcast %cst_8 : f32 to vector<256x1xf32>
    %19 = arith.maximumf %17, %18 : vector<256x1xf32>
    %20 = math.rsqrt %19 : vector<256x1xf32>
    %cst_9 = arith.constant 1.000000e+00 : f32
    %21 = vector.shape_cast %20 : vector<256x1xf32> to vector<256x1xf32>
    %22 = vector.broadcast %21 : vector<256x1xf32> to vector<256x256xf32>
    %23 = vector.broadcast %cst_9 : f32 to vector<256x256xf32>
    %24 = arith.select %13, %22, %23 : vector<256x256xi1>, vector<256x256xf32>
    %c32_i32_10 = arith.constant 32 : i32
    %25 = vector.broadcast %c32_i32_10 : i32 to vector<256x256xi32>
    %26 = arith.cmpi sge, %7, %25 : vector<256x256xi32>
    %c64_i32 = arith.constant 64 : i32
    %27 = vector.broadcast %c64_i32 : i32 to vector<256x256xi32>
    %28 = arith.cmpi slt, %7, %27 : vector<256x256xi32>
    %29 = arith.andi %26, %28 : vector<256x256xi1>
    %cst_11 = arith.constant 0.000000e+00 : f32
    %30 = vector.broadcast %cst_11 : f32 to vector<256x256xf32>
    %31 = arith.select %29, %8, %30 : vector<256x256xi1>, vector<256x256xf32>
    %cst_12 = arith.constant dense<0.000000e+00> : vector<256xf32>
    %32 = vector.multi_reduction <add>, %31, %cst_12 [1] : vector<256x256xf32> to vector<256xf32>
    %33 = vector.shape_cast %32 : vector<256xf32> to vector<256x1xf32>
    %cst_13 = arith.constant 1.000000e-24 : f32
    %34 = vector.broadcast %cst_13 : f32 to vector<256x1xf32>
    %35 = arith.maximumf %33, %34 : vector<256x1xf32>
    %36 = math.rsqrt %35 : vector<256x1xf32>
    %37 = vector.shape_cast %36 : vector<256x1xf32> to vector<256x1xf32>
    %38 = vector.broadcast %37 : vector<256x1xf32> to vector<256x256xf32>
    %39 = arith.select %29, %38, %24 : vector<256x256xi1>, vector<256x256xf32>
    %40 = arith.mulf %6, %39 : vector<256x256xf32>
    %c0_14 = arith.constant 0 : index
    %c0_15 = arith.constant 0 : index
    %c0_16 = arith.constant 0 : index
    %41 = vector.load %arg4[%c0_14, %c0_15, %c0_16] : memref<1x256x256xf32, #tpu.memory_space<vmem>>, vector<1x256x256xf32>
    %42 = vector.shape_cast %41 : vector<1x256x256xf32> to vector<256x256xf32>
    %43 = vector.shape_cast %40 : vector<256x256xf32> to vector<1x256x256xf32>
    tpu.vector_store %arg4[%c0_14, %c0_15, %c0_16], %43 {strides = array<i32>} : memref<1x256x256xf32, #tpu.memory_space<vmem>>, vector<1x256x256xf32>,
    return
  }
  func.func @transform_0(%arg0: i32) -> (i32, i32, i32) {
    %c0_i32 = arith.constant 0 : i32
    %c0_i32_0 = arith.constant 0 : i32
    %c0_i32_1 = arith.constant 0 : i32
    return %arg0, %c0_i32, %c0_i32_0 : i32, i32, i32
  }
  func.func @transform_1(%arg0: i32) -> (i32, i32) {
    %c0_i32 = arith.constant 0 : i32
    %c0_i32_0 = arith.constant 0 : i32
    %c0_i32_1 = arith.constant 0 : i32
    return %c0_i32, %c0_i32_0 : i32, i32
  }
  func.func @transform_2(%arg0: i32) -> (i32, i32) {
    %c0_i32 = arith.constant 0 : i32
    %c0_i32_0 = arith.constant 0 : i32
    %c0_i32_1 = arith.constant 0 : i32
    return %c0_i32, %c0_i32_0 : i32, i32
  }
  func.func @transform_3(%arg0: i32) -> (i32, i32, i32) {
    %c0_i32 = arith.constant 0 : i32
    %c0_i32_0 = arith.constant 0 : i32
    %c0_i32_1 = arith.constant 0 : i32
    return %arg0, %c0_i32, %c0_i32_0 : i32, i32, i32
  }
}

</mosaic_0001>

<llo_original>
// kernel: _forward.2
$region0: #{_forward.2}
  #allocation0 [shape = 'u32[]', space=smem, size = 0x4, offset = 0x4, fixed_abs, tag = 'smem constant byte address 0x4 - core index']
  #allocation1 [shape = 'u32[144,128]{1,0:T(1,128)}', space=vmem, size = 0x12000, scoped, tag = 'internal scratch']
  %s0 = inlined_call_operand.vmem [shape: f32[2,256,144], index: 0, kind: input, shape index: {}]
  %s1 = inlined_call_operand.vmem [shape: f32[144,32], index: 1, kind: input, shape index: {}]
  %s2 = inlined_call_operand.vmem [shape: f32[1,32], index: 2, kind: input, shape index: {}]
  %s3 = inlined_call_operand.vmem [shape: f32[2,256,32], index: 3, kind: output, shape index: {}]
  %s4 = sld [smem:[#allocation0]]
  $region45: #{_forward.2} parent=0
    _
  %s6 = ssub.s32 1, %s4
  %s7 = scalar_select 0, %s6, %s4
  loop: start=0, step=1, limit=4
  $region2: #{_forward.2} parent=0 // loop_pre_header
    _
  $region3: #{_forward.2} parent=0 // loop_header
    %s9 = sphi 0, %s13
    %p10 = scmp.ge.s32.totalorder %s9, 4
    %s19 = sphi 0, %s21
    %s22 = sphi 0, %s19
    %s23 = sphi 0, %s22
    %s39 = sphi 0, %s23
    %s43 = sphi 0, %s43
    %s45 = sphi 0, %s43
    %s46 = sphi 0, %s45
    %s60 = sphi 0, %s46
    %s64 = sphi 0, %s64
    %s66 = sphi 0, %s64
    %s67 = sphi 0, %s66
    %s81 = sphi 0, %s67
    %s87 = sphi 0, %s89
    %s90 = sphi 0, %s87
    %s91 = sphi 0, %s90
    %s107 = sphi 0, %s91
  $region4: #{_forward.2} parent=0 // loop_header_branch
    %12 = sbr.rel (%p10) target = $region8
  $region5: #{_forward.2} parent=0 // loop_body
    %s14 = ssub.s32 %s9, 1
    %s15 = ssub.s32 %s9, 2
    %s16 = sadd.s32 %s9, 1
    %s17 = ssub.s32 %s9, %s16
    %p18 = scmp.eq.s32.totalorder %s17, 0
    %s20 = sadd.s32 %s19, 1
    %s21 = scalar_select %p18, %s19, %s20
    %p24 = pneg %p18
    %p25 = scmp.eq.s32.totalorder %s9, 1
    %p26 = por %p24, %p25
    %p27 = scmp.ne.s32.totalorder %s19, %s22
    %p28 = scmp.eq.s32.totalorder %s9, 0
    %p29 = por %p27, %p28
    %p30 = scmp.ne.s32.totalorder %s19, %s22
    %p31 = scmp.eq.s32.totalorder %s14, 1
    %p32 = por %p30, %p31
    %p33 = scmp.ne.s32.totalorder %s22, %s23
    %p34 = scmp.eq.s32.totalorder %s14, 0
    %p35 = por %p33, %p34
    %p36 = scmp.ne.s32.totalorder %s22, %s23
    %p37 = scmp.eq.s32.totalorder %s15, 1
    %p38 = por %p36, %p37
    %p40 = scmp.ne.s32.totalorder %s23, %s39
    %p41 = scmp.eq.s32.totalorder %s15, 0
    %p42 = por %p40, %p41
    %s44 = sadd.s32 %s43, 1
    %p47 = scmp.eq.s32.totalorder %s9, 1
    %p48 = scmp.ne.s32.totalorder %s43, %s45
    %p49 = scmp.eq.s32.totalorder %s9, 0
    %p50 = por %p48, %p49
    %p51 = scmp.ne.s32.totalorder %s43, %s45
    %p52 = scmp.eq.s32.totalorder %s14, 1
    %p53 = por %p51, %p52
    %p54 = scmp.ne.s32.totalorder %s45, %s46
    %p55 = scmp.eq.s32.totalorder %s14, 0
    %p56 = por %p54, %p55
    %p57 = scmp.ne.s32.totalorder %s45, %s46
    %p58 = scmp.eq.s32.totalorder %s15, 1
    %p59 = por %p57, %p58
    %p61 = scmp.ne.s32.totalorder %s46, %s60
    %p62 = scmp.eq.s32.totalorder %s15, 0
    %p63 = por %p61, %p62
    %s65 = sadd.s32 %s64, 1
    %p68 = scmp.eq.s32.totalorder %s9, 1
    %p69 = scmp.ne.s32.totalorder %s64, %s66
    %p70 = scmp.eq.s32.totalorder %s9, 0
    %p71 = por %p69, %p70
    %p72 = scmp.ne.s32.totalorder %s64, %s66
    %p73 = scmp.eq.s32.totalorder %s14, 1
    %p74 = por %p72, %p73
    %p75 = scmp.ne.s32.totalorder %s66, %s67
    %p76 = scmp.eq.s32.totalorder %s14, 0
    %p77 = por %p75, %p76
    %p78 = scmp.ne.s32.totalorder %s66, %s67
    %p79 = scmp.eq.s32.totalorder %s15, 1
    %p80 = por %p78, %p79
    %p82 = scmp.ne.s32.totalorder %s67, %s81
    %p83 = scmp.eq.s32.totalorder %s15, 0
    %p84 = por %p82, %p83
    %s85 = ssub.s32 %s9, %s16
    %p86 = scmp.eq.s32.totalorder %s85, 0
    %s88 = sadd.s32 %s87, 1
    %s89 = scalar_select %p86, %s87, %s88
    %p92 = pneg %p86
    %p93 = scmp.eq.s32.totalorder %s9, 1
    %p94 = por %p92, %p93
    %p95 = scmp.ne.s32.totalorder %s87, %s90
    %p96 = scmp.eq.s32.totalorder %s9, 0
    %p97 = por %p95, %p96
    %p98 = scmp.ne.s32.totalorder %s87, %s90
    %p99 = scmp.eq.s32.totalorder %s14, 1
    %p100 = por %p98, %p99
    %p101 = scmp.ne.s32.totalorder %s90, %s91
    %p102 = scmp.eq.s32.totalorder %s14, 0
    %p103 = por %p101, %p102
    %p104 = scmp.ne.s32.totalorder %s90, %s91
    %p105 = scmp.eq.s32.totalorder %s15, 1
    %p106 = por %p104, %p105
    %p108 = scmp.ne.s32.totalorder %s91, %s107
    %p109 = scmp.eq.s32.totalorder %s15, 0
    %p110 = por %p108, %p109
    %p111 = scmp.le.s32.totalorder 1, %s9
    %p112 = scmp.lt.s32.totalorder %s9, 3
    %p113 = pnand %p111, %p112
    %p114 = pneg %p113
    // Predicated region
    $region9: #{_forward.2} parent=5 // pred_check
      _
    $region10: #{_forward.2} parent=5 // pred_check_branch
      %116 = sbr.rel (%p113) target = $region12
    $region11: #{_forward.2} parent=5 // pred_region
      %s117 = ssub.s32 %s9, 1
      // Predicated region
      $region13: #{_forward.2} parent=11 // pred_check
        %p118 = pneg %p56
      $region14: #{_forward.2} parent=11 // pred_check_branch
        %120 = sbr.rel (%p118) target = $region16
      $region15: #{_forward.2} parent=11 // pred_region
        _
      $region16: #{_forward.2} parent=11 // pred_fallthru
        _
      // Predicated region
      $region17: #{_forward.2} parent=11 // pred_check
        %p121 = pneg %p77
      $region18: #{_forward.2} parent=11 // pred_check_branch
        %123 = sbr.rel (%p121) target = $region20
      $region19: #{_forward.2} parent=11 // pred_region
        _
      $region20: #{_forward.2} parent=11 // pred_fallthru
        _
    $region12: #{_forward.2} parent=5 // pred_fallthru
      _
    %p124 = scmp.lt.s32.totalorder %s9, 2
    // Predicated region
    $region21: #{_forward.2} parent=5 // pred_check
      %p125 = pneg %p124
    $region22: #{_forward.2} parent=5 // pred_check_branch
      %127 = sbr.rel (%p125) target = $region24
    $region23: #{_forward.2} parent=5 // pred_region
      // Predicated region
      $region25: #{_forward.2} parent=23 // pred_check
        %p128 = pneg %p29
      $region26: #{_forward.2} parent=23 // pred_check_branch
        %130 = sbr.rel (%p128) target = $region28
      $region27: #{_forward.2} parent=23 // pred_region
        %p131 = scmp.lt.s32.totalorder %s9, 1
        %s132 = scalar_select %p131, %s9, 1
        %s133 = smul.addr %s132, 64
        %s134 = smul.addr %s133, 8
        %s135 = scalar_lea.vmem %s0, %s134
      $region28: #{_forward.2} parent=23 // pred_fallthru
        _
    $region24: #{_forward.2} parent=5 // pred_fallthru
      _
    %p136 = scmp.le.s32.totalorder 1, %s9
    %p137 = scmp.lt.s32.totalorder %s9, 3
    %p138 = pnand %p136, %p137
    %p139 = pneg %p138
    // Predicated region
    $region29: #{_forward.2} parent=5 // pred_check
      _
    $region30: #{_forward.2} parent=5 // pred_check_branch
      %141 = sbr.rel (%p138) target = $region32
    $region31: #{_forward.2} parent=5 // pred_region
      %s142 = ssub.s32 %s9, 1
      %p143 = scmp.lt.s32.totalorder %s14, 1
      %s144 = scalar_select %p143, %s14, 1
      %s145 = smul.addr %s144, 64
      %s146 = smul.addr %s145, 8
      %s147 = scalar_lea.vmem %s0, %s146
      %p148 = pneg %p35
      %p149 = pneg %p32
      %p150 = pneg %p56
      %p151 = pneg %p53
      %p152 = pneg %p77
      %p153 = pneg %p74
      %p154 = pneg %p103
      %p155 = pneg %p100
      %p156 = scmp.lt.s32.totalorder %s14, 1
      %s157 = scalar_select %p156, %s14, 1
      %s158 = smul.addr %s157, 32
      %s159 = smul.addr %s158, 8
      %s160 = scalar_lea.vmem %s3, %s159
      %p161 = scmp.lt.s32.totalorder %s14, 1
      %s162 = scalar_select %p161, %s14, 1
      %s163 = smul.addr %s162, 64
      %s164 = smul.addr %s163, 8
      %s165 = scalar_lea.vmem %s0, %s164
      %p166 = scmp.lt.s32.totalorder %s14, 1
      %s167 = scalar_select %p166, %s14, 1
      %s168 = smul.addr %s167, 32
      %s169 = smul.addr %s168, 8
      %s170 = scalar_lea.vmem %s3, %s169
      %v171 = vld [vmem:[%s165] sm:$0xff]
      %v172 = vld [vmem:[%s165 + $0x8] sm:$0xff]
      %v173 = vld [vmem:[%s165 + $0x10] sm:$0xff]
      %v174 = vld [vmem:[%s165 + $0x18] sm:$0xff]
      %v175 = vld [vmem:[%s165 + $0x20] sm:$0xff]
      %v176 = vld [vmem:[%s165 + $0x28] sm:$0xff]
      %v177 = vld [vmem:[%s165 + $0x30] sm:$0xff]
      %v178 = vld [vmem:[%s165 + $0x38] sm:$0xff]
      %v179 = vld [vmem:[%s165 + $0x40] sm:$0xff]
      %v180 = vld [vmem:[%s165 + $0x48] sm:$0xff]
      %v181 = vld [vmem:[%s165 + $0x50] sm:$0xff]
      %v182 = vld [vmem:[%s165 + $0x58] sm:$0xff]
      %v183 = vld [vmem:[%s165 + $0x60] sm:$0xff]
      %v184 = vld [vmem:[%s165 + $0x68] sm:$0xff]
      %v185 = vld [vmem:[%s165 + $0x70] sm:$0xff]
      %v186 = vld [vmem:[%s165 + $0x78] sm:$0xff]
      %v187 = vld [vmem:[%s165 + $0x80] sm:$0xff]
      %v188 = vld [vmem:[%s165 + $0x88] sm:$0xff]
      %v189 = vld [vmem:[%s165 + $0x90] sm:$0xff]
      %v190 = vld [vmem:[%s165 + $0x98] sm:$0xff]
      %v191 = vld [vmem:[%s165 + $0xa0] sm:$0xff]
      %v192 = vld [vmem:[%s165 + $0xa8] sm:$0xff]
      %v193 = vld [vmem:[%s165 + $0xb0] sm:$0xff]
      %v194 = vld [vmem:[%s165 + $0xb8] sm:$0xff]
      %v195 = vld [vmem:[%s165 + $0xc0] sm:$0xff]
      %v196 = vld [vmem:[%s165 + $0xc8] sm:$0xff]
      %v197 = vld [vmem:[%s165 + $0xd0] sm:$0xff]
      %v198 = vld [vmem:[%s165 + $0xd8] sm:$0xff]
      %v199 = vld [vmem:[%s165 + $0xe0] sm:$0xff]
      %v200 = vld [vmem:[%s165 + $0xe8] sm:$0xff]
      %v201 = vld [vmem:[%s165 + $0xf0] sm:$0xff]
      %v202 = vld [vmem:[%s165 + $0xf8] sm:$0xff]
      %v203 = vld [vmem:[%s165 + $0x100] sm:$0xff]
      %v204 = vld [vmem:[%s165 + $0x108] sm:$0xff]
      %v205 = vld [vmem:[%s165 + $0x110] sm:$0xff]
      %v206 = vld [vmem:[%s165 + $0x118] sm:$0xff]
      %v207 = vld [vmem:[%s165 + $0x120] sm:$0xff]
      %v208 = vld [vmem:[%s165 + $0x128] sm:$0xff]
      %v209 = vld [vmem:[%s165 + $0x130] sm:$0xff]
      %v210 = vld [vmem:[%s165 + $0x138] sm:$0xff]
      %v211 = vld [vmem:[%s165 + $0x140] sm:$0xff]
      %v212 = vld [vmem:[%s165 + $0x148] sm:$0xff]
      %v213 = vld [vmem:[%s165 + $0x150] sm:$0xff]
      %v214 = vld [vmem:[%s165 + $0x158] sm:$0xff]
      %v215 = vld [vmem:[%s165 + $0x160] sm:$0xff]
      %v216 = vld [vmem:[%s165 + $0x168] sm:$0xff]
      %v217 = vld [vmem:[%s165 + $0x170] sm:$0xff]
      %v218 = vld [vmem:[%s165 + $0x178] sm:$0xff]
      %v219 = vld [vmem:[%s165 + $0x180] sm:$0xff]
      %v220 = vld [vmem:[%s165 + $0x188] sm:$0xff]
      %v221 = vld [vmem:[%s165 + $0x190] sm:$0xff]
      %v222 = vld [vmem:[%s165 + $0x198] sm:$0xff]
      %v223 = vld [vmem:[%s165 + $0x1a0] sm:$0xff]
      %v224 = vld [vmem:[%s165 + $0x1a8] sm:$0xff]
      %v225 = vld [vmem:[%s165 + $0x1b0] sm:$0xff]
      %v226 = vld [vmem:[%s165 + $0x1b8] sm:$0xff]
      %v227 = vld [vmem:[%s165 + $0x1c0] sm:$0xff]
      %v228 = vld [vmem:[%s165 + $0x1c8] sm:$0xff]
      %v229 = vld [vmem:[%s165 + $0x1d0] sm:$0xff]
      %v230 = vld [vmem:[%s165 + $0x1d8] sm:$0xff]
      %v231 = vld [vmem:[%s165 + $0x1e0] sm:$0xff]
      %v232 = vld [vmem:[%s165 + $0x1e8] sm:$0xff]
      %v233 = vld [vmem:[%s165 + $0x1f0] sm:$0xff]
      %v234 = vld [vmem:[%s165 + $0x1f8] sm:$0xff]
      %v235 = vld [vmem:[%s1] sm:$0xff]
      %v236 = vld [vmem:[%s1 + $0x8] sm:$0xff]
      %v237 = vld [vmem:[%s1 + $0x10] sm:$0xff]
      %v238 = vld [vmem:[%s1 + $0x18] sm:$0xff]
      %v239 = vld [vmem:[%s1 + $0x20] sm:$0xff]
      %v240 = vld [vmem:[%s1 + $0x28] sm:$0xff]
      %v241 = vld [vmem:[%s1 + $0x30] sm:$0xff]
      %v242 = vld [vmem:[%s1 + $0x38] sm:$0xff]
      %v243 = vld [vmem:[%s1 + $0x40] sm:$0xff]
      %v244 = vld [vmem:[%s1 + $0x48] sm:$0xff]
      %v245 = vld [vmem:[%s1 + $0x50] sm:$0xff]
      %v246 = vld [vmem:[%s1 + $0x58] sm:$0xff]
      %v247 = vld [vmem:[%s1 + $0x60] sm:$0xff]
      %v248 = vld [vmem:[%s1 + $0x68] sm:$0xff]
      %v249 = vld [vmem:[%s1 + $0x70] sm:$0xff]
      %v250 = vld [vmem:[%s1 + $0x78] sm:$0xff]
      %v251 = vld [vmem:[%s1 + $0x80] sm:$0xff]
      %v252 = vld [vmem:[%s1 + $0x88] sm:$0xff]
      %v253 = vld [vmem:[%s2] sm:$0x1]
      %v255 = vlaneseq
      %v256 = vshrl.u32 %v255, 7
      %v257 = vsub.s32 0, %v256
      %v258 = vrot.slane %v253, %v257
      %vm260 = vcmask 130048
      %v262 = vsel %vm260, %v172, 0
      %v265 = vsel %vm260, %v174, 0
      %v268 = vsel %vm260, %v176, 0
      %v271 = vsel %vm260, %v178, 0
      %v274 = vsel %vm260, %v180, 0
      %v277 = vsel %vm260, %v182, 0
      %v280 = vsel %vm260, %v184, 0
      %v283 = vsel %vm260, %v186, 0
      %v286 = vsel %vm260, %v188, 0
      %v289 = vsel %vm260, %v190, 0
      %v292 = vsel %vm260, %v192, 0
      %v295 = vsel %vm260, %v194, 0
      %v298 = vsel %vm260, %v196, 0
      %v301 = vsel %vm260, %v198, 0
      %v304 = vsel %vm260, %v200, 0
      %v307 = vsel %vm260, %v202, 0
      %v310 = vsel %vm260, %v204, 0
      %v313 = vsel %vm260, %v206, 0
      %v316 = vsel %vm260, %v208, 0
      %v319 = vsel %vm260, %v210, 0
      %v322 = vsel %vm260, %v212, 0
      %v325 = vsel %vm260, %v214, 0
      %v328 = vsel %vm260, %v216, 0
      %v331 = vsel %vm260, %v218, 0
      %v334 = vsel %vm260, %v220, 0
      %v337 = vsel %vm260, %v222, 0
      %v340 = vsel %vm260, %v224, 0
      %v343 = vsel %vm260, %v226, 0
      %v346 = vsel %vm260, %v228, 0
      %v349 = vsel %vm260, %v230, 0
      %v352 = vsel %vm260, %v232, 0
      %v355 = vsel %vm260, %v234, 0
      %357 = vmatprep.subr.mxu0 0.0
      %358 = vmatpush1.msra.mxu0 %v250
      %359 = vmatprep.subr.mxu0 0.0
      %360 = vmatpush1.msra.mxu0 %v249
      %361 = vmatprep.subr.mxu0 0.0
      %362 = vmatpush1.msra.mxu0 %v248
      %363 = vmatprep.subr.mxu0 0.0
      %364 = vmatpush1.msra.mxu0 %v247
      %365 = vmatprep.subr.mxu0 0.0
      %366 = vmatpush1.msra.mxu0 %v246
      %367 = vmatprep.subr.mxu0 0.0
      %368 = vmatpush1.msra.mxu0 %v245
      %369 = vmatprep.subr.mxu0 0.0
      %370 = vmatpush1.msra.mxu0 %v244
      %371 = vmatprep.subr.mxu0 0.0
      %372 = vmatpush1.msra.mxu0 %v243
      %373 = vmatprep.subr.mxu0 0.0
      %374 = vmatpush1.msra.mxu0 %v242
      %375 = vmatprep.subr.mxu0 0.0
      %376 = vmatpush1.msra.mxu0 %v241
      %377 = vmatprep.subr.mxu0 0.0
      %378 = vmatpush1.msra.mxu0 %v240
      %379 = vmatprep.subr.mxu0 0.0
      %380 = vmatpush1.msra.mxu0 %v239
      %381 = vmatprep.subr.mxu0 0.0
      %382 = vmatpush1.msra.mxu0 %v238
      %383 = vmatprep.subr.mxu0 0.0
      %384 = vmatpush1.msra.mxu0 %v237
      %385 = vmatprep.subr.mxu0 0.0
      %386 = vmatpush1.msra.mxu0 %v236
      %387 = vmatprep.subr.mxu0 0.0
      %388 = vmatpush1.msra.mxu0 %v235
      %389 = vmatprep.subr.mxu0 0.0
      %390 = vmatpush2.msra.mxu0 0.0
      %391 = vmatprep.subr.mxu0 0.0
      %392 = vmatpush2.msra.mxu0 0.0
      %393 = vmatprep.subr.mxu0 0.0
      %394 = vmatpush2.msra.mxu0 0.0
      %395 = vmatprep.subr.mxu0 0.0
      %396 = vmatpush2.msra.mxu0 0.0
      %397 = vmatprep.subr.mxu0 0.0
      %398 = vmatpush2.msra.mxu0 0.0
      %399 = vmatprep.subr.mxu0 0.0
      %400 = vmatpush2.msra.mxu0 0.0
      %401 = vmatprep.subr.mxu0 0.0
      %402 = vmatpush2.msra.mxu0 0.0
      %403 = vmatprep.subr.mxu0 0.0
      %404 = vmatpush2.msra.mxu0 0.0
      %405 = vmatprep.subr.mxu0 0.0
      %406 = vmatpush2.msra.mxu0 0.0
      %407 = vmatprep.subr.mxu0 0.0
      %408 = vmatpush2.msra.mxu0 0.0
      %409 = vmatprep.subr.mxu0 0.0
      %410 = vmatpush2.msra.mxu0 0.0
      %411 = vmatprep.subr.mxu0 0.0
      %412 = vmatpush2.msra.mxu0 0.0
      %413 = vmatprep.subr.mxu0 0.0
      %414 = vmatpush2.msra.mxu0 0.0
      %415 = vmatprep.subr.mxu0 0.0
      %416 = vmatpush2.msra.mxu0 0.0
      %417 = vmatprep.subr.mxu0 0.0
      %418 = vmatpush2.msra.mxu0 %v252
      %419 = vmatprep.subr.mxu0 0.0
      %420 = vmatpush2.msra.mxu0 %v251
      %421 = vmatprep.mubr.f32.mxu0 %v262
      %422 = vmatmul.mubr.f32.gmra.mxu0 %v171
      %v423 = vpop.f32.mrf.mxu0
      %v424 = vadd.f32 %v258, %v423
      %v425 = vpop.f32.mrf.mxu0
      %426 = vmatprep.mubr.f32.mxu0 %v265
      %427 = vmatmul.mubr.f32.gmra.mxu0 %v173
      %v428 = vpop.f32.mrf.mxu0
      %v429 = vadd.f32 %v258, %v428
      %v430 = vpop.f32.mrf.mxu0
      %431 = vmatprep.mubr.f32.mxu0 %v268
      %432 = vmatmul.mubr.f32.gmra.mxu0 %v175
      %v433 = vpop.f32.mrf.mxu0
      %v434 = vadd.f32 %v258, %v433
      %v435 = vpop.f32.mrf.mxu0
      %436 = vmatprep.mubr.f32.mxu0 %v271
      %437 = vmatmul.mubr.f32.gmra.mxu0 %v177
      %v438 = vpop.f32.mrf.mxu0
      %v439 = vadd.f32 %v258, %v438
      %v440 = vpop.f32.mrf.mxu0
      %441 = vmatprep.mubr.f32.mxu0 %v274
      %442 = vmatmul.mubr.f32.gmra.mxu0 %v179
      %v443 = vpop.f32.mrf.mxu0
      %v444 = vadd.f32 %v258, %v443
      %v445 = vpop.f32.mrf.mxu0
      %446 = vmatprep.mubr.f32.mxu0 %v277
      %447 = vmatmul.mubr.f32.gmra.mxu0 %v181
      %v448 = vpop.f32.mrf.mxu0
      %v449 = vadd.f32 %v258, %v448
      %v450 = vpop.f32.mrf.mxu0
      %451 = vmatprep.mubr.f32.mxu0 %v280
      %452 = vmatmul.mubr.f32.gmra.mxu0 %v183
      %v453 = vpop.f32.mrf.mxu0
      %v454 = vadd.f32 %v258, %v453
      %v455 = vpop.f32.mrf.mxu0
      %456 = vmatprep.mubr.f32.mxu0 %v283
      %457 = vmatmul.mubr.f32.gmra.mxu0 %v185
      %v458 = vpop.f32.mrf.mxu0
      %v459 = vadd.f32 %v258, %v458
      %v460 = vpop.f32.mrf.mxu0
      %461 = vmatprep.mubr.f32.mxu0 %v286
      %462 = vmatmul.mubr.f32.gmra.mxu0 %v187
      %v463 = vpop.f32.mrf.mxu0
      %v464 = vadd.f32 %v258, %v463
      %v465 = vpop.f32.mrf.mxu0
      %466 = vmatprep.mubr.f32.mxu0 %v289
      %467 = vmatmul.mubr.f32.gmra.mxu0 %v189
      %v468 = vpop.f32.mrf.mxu0
      %v469 = vadd.f32 %v258, %v468
      %v470 = vpop.f32.mrf.mxu0
      %471 = vmatprep.mubr.f32.mxu0 %v292
      %472 = vmatmul.mubr.f32.gmra.mxu0 %v191
      %v473 = vpop.f32.mrf.mxu0
      %v474 = vadd.f32 %v258, %v473
      %v475 = vpop.f32.mrf.mxu0
      %476 = vmatprep.mubr.f32.mxu0 %v295
      %477 = vmatmul.mubr.f32.gmra.mxu0 %v193
      %v478 = vpop.f32.mrf.mxu0
      %v479 = vadd.f32 %v258, %v478
      %v480 = vpop.f32.mrf.mxu0
      %481 = vmatprep.mubr.f32.mxu0 %v298
      %482 = vmatmul.mubr.f32.gmra.mxu0 %v195
      %v483 = vpop.f32.mrf.mxu0
      %v484 = vadd.f32 %v258, %v483
      %v485 = vpop.f32.mrf.mxu0
      %486 = vmatprep.mubr.f32.mxu0 %v301
      %487 = vmatmul.mubr.f32.gmra.mxu0 %v197
      %v488 = vpop.f32.mrf.mxu0
      %v489 = vadd.f32 %v258, %v488
      %v490 = vpop.f32.mrf.mxu0
      %491 = vmatprep.mubr.f32.mxu0 %v304
      %492 = vmatmul.mubr.f32.gmra.mxu0 %v199
      %v493 = vpop.f32.mrf.mxu0
      %v494 = vadd.f32 %v258, %v493
      %v495 = vpop.f32.mrf.mxu0
      %496 = vmatprep.mubr.f32.mxu0 %v307
      %497 = vmatmul.mubr.f32.gmra.mxu0 %v201
      %v498 = vpop.f32.mrf.mxu0
      %v499 = vadd.f32 %v258, %v498
      %v500 = vpop.f32.mrf.mxu0
      %501 = vmatprep.mubr.f32.mxu0 %v310
      %502 = vmatmul.mubr.f32.gmra.mxu0 %v203
      %v503 = vpop.f32.mrf.mxu0
      %v504 = vadd.f32 %v258, %v503
      %v505 = vpop.f32.mrf.mxu0
      %506 = vmatprep.mubr.f32.mxu0 %v313
      %507 = vmatmul.mubr.f32.gmra.mxu0 %v205
      %v508 = vpop.f32.mrf.mxu0
      %v509 = vadd.f32 %v258, %v508
      %v510 = vpop.f32.mrf.mxu0
      %511 = vmatprep.mubr.f32.mxu0 %v316
      %512 = vmatmul.mubr.f32.gmra.mxu0 %v207
      %v513 = vpop.f32.mrf.mxu0
      %v514 = vadd.f32 %v258, %v513
      %v515 = vpop.f32.mrf.mxu0
      %516 = vmatprep.mubr.f32.mxu0 %v319
      %517 = vmatmul.mubr.f32.gmra.mxu0 %v209
      %v518 = vpop.f32.mrf.mxu0
      %v519 = vadd.f32 %v258, %v518
      %v520 = vpop.f32.mrf.mxu0
      %521 = vmatprep.mubr.f32.mxu0 %v322
      %522 = vmatmul.mubr.f32.gmra.mxu0 %v211
      %v523 = vpop.f32.mrf.mxu0
      %v524 = vadd.f32 %v258, %v523
      %v525 = vpop.f32.mrf.mxu0
      %526 = vmatprep.mubr.f32.mxu0 %v325
      %527 = vmatmul.mubr.f32.gmra.mxu0 %v213
      %v528 = vpop.f32.mrf.mxu0
      %v529 = vadd.f32 %v258, %v528
      %v530 = vpop.f32.mrf.mxu0
      %531 = vmatprep.mubr.f32.mxu0 %v328
      %532 = vmatmul.mubr.f32.gmra.mxu0 %v215
      %v533 = vpop.f32.mrf.mxu0
      %v534 = vadd.f32 %v258, %v533
      %v535 = vpop.f32.mrf.mxu0
      %536 = vmatprep.mubr.f32.mxu0 %v331
      %537 = vmatmul.mubr.f32.gmra.mxu0 %v217
      %v538 = vpop.f32.mrf.mxu0
      %v539 = vadd.f32 %v258, %v538
      %v540 = vpop.f32.mrf.mxu0
      %541 = vmatprep.mubr.f32.mxu0 %v334
      %542 = vmatmul.mubr.f32.gmra.mxu0 %v219
      %v543 = vpop.f32.mrf.mxu0
      %v544 = vadd.f32 %v258, %v543
      %v545 = vpop.f32.mrf.mxu0
      %546 = vmatprep.mubr.f32.mxu0 %v337
      %547 = vmatmul.mubr.f32.gmra.mxu0 %v221
      %v548 = vpop.f32.mrf.mxu0
      %v549 = vadd.f32 %v258, %v548
      %v550 = vpop.f32.mrf.mxu0
      %551 = vmatprep.mubr.f32.mxu0 %v340
      %552 = vmatmul.mubr.f32.gmra.mxu0 %v223
      %v553 = vpop.f32.mrf.mxu0
      %v554 = vadd.f32 %v258, %v553
      %v555 = vpop.f32.mrf.mxu0
      %556 = vmatprep.mubr.f32.mxu0 %v343
      %557 = vmatmul.mubr.f32.gmra.mxu0 %v225
      %v558 = vpop.f32.mrf.mxu0
      %v559 = vadd.f32 %v258, %v558
      %v560 = vpop.f32.mrf.mxu0
      %561 = vmatprep.mubr.f32.mxu0 %v346
      %562 = vmatmul.mubr.f32.gmra.mxu0 %v227
      %v563 = vpop.f32.mrf.mxu0
      %v564 = vadd.f32 %v258, %v563
      %v565 = vpop.f32.mrf.mxu0
      %566 = vmatprep.mubr.f32.mxu0 %v349
      %567 = vmatmul.mubr.f32.gmra.mxu0 %v229
      %v568 = vpop.f32.mrf.mxu0
      %v569 = vadd.f32 %v258, %v568
      %v570 = vpop.f32.mrf.mxu0
      %571 = vmatprep.mubr.f32.mxu0 %v352
      %572 = vmatmul.mubr.f32.gmra.mxu0 %v231
      %v573 = vpop.f32.mrf.mxu0
      %v574 = vadd.f32 %v258, %v573
      %v575 = vpop.f32.mrf.mxu0
      %576 = vmatprep.mubr.f32.mxu0 %v355
      %577 = vmatmul.mubr.f32.gmra.mxu0 %v233
      %v578 = vpop.f32.mrf.mxu0
      %v579 = vadd.f32 %v258, %v578
      %v580 = vpop.f32.mrf.mxu0
      %581 = vdwg.mxu0
      %v582 = vmax.f32 %v424, 0.0
      %v583 = vmax.f32 %v429, 0.0
      %v584 = vmax.f32 %v434, 0.0
      %v585 = vmax.f32 %v439, 0.0
      %v586 = vmax.f32 %v444, 0.0
      %v587 = vmax.f32 %v449, 0.0
      %v588 = vmax.f32 %v454, 0.0
      %v589 = vmax.f32 %v459, 0.0
      %v590 = vmax.f32 %v464, 0.0
      %v591 = vmax.f32 %v469, 0.0
      %v592 = vmax.f32 %v474, 0.0
      %v593 = vmax.f32 %v479, 0.0
      %v594 = vmax.f32 %v484, 0.0
      %v595 = vmax.f32 %v489, 0.0
      %v596 = vmax.f32 %v494, 0.0
      %v597 = vmax.f32 %v499, 0.0
      %v598 = vmax.f32 %v504, 0.0
      %v599 = vmax.f32 %v509, 0.0
      %v600 = vmax.f32 %v514, 0.0
      %v601 = vmax.f32 %v519, 0.0
      %v602 = vmax.f32 %v524, 0.0
      %v603 = vmax.f32 %v529, 0.0
      %v604 = vmax.f32 %v534, 0.0
      %v605 = vmax.f32 %v539, 0.0
      %v606 = vmax.f32 %v544, 0.0
      %v607 = vmax.f32 %v549, 0.0
      %v608 = vmax.f32 %v554, 0.0
      %v609 = vmax.f32 %v559, 0.0
      %v610 = vmax.f32 %v564, 0.0
      %v611 = vmax.f32 %v569, 0.0
      %v612 = vmax.f32 %v574, 0.0
      %v613 = vmax.f32 %v579, 0.0
      %vm614 = vcmask 261120
      %615 = vst.msk [vmem:[%s170] sm:$0xff] %vm614, %v582
      %616 = vst.msk [vmem:[%s170 + $0x8] sm:$0xff] %vm614, %v583
      %617 = vst.msk [vmem:[%s170 + $0x10] sm:$0xff] %vm614, %v584
      %618 = vst.msk [vmem:[%s170 + $0x18] sm:$0xff] %vm614, %v585
      %619 = vst.msk [vmem:[%s170 + $0x20] sm:$0xff] %vm614, %v586
      %620 = vst.msk [vmem:[%s170 + $0x28] sm:$0xff] %vm614, %v587
      %621 = vst.msk [vmem:[%s170 + $0x30] sm:$0xff] %vm614, %v588
      %622 = vst.msk [vmem:[%s170 + $0x38] sm:$0xff] %vm614, %v589
      %623 = vst.msk [vmem:[%s170 + $0x40] sm:$0xff] %vm614, %v590
      %624 = vst.msk [vmem:[%s170 + $0x48] sm:$0xff] %vm614, %v591
      %625 = vst.msk [vmem:[%s170 + $0x50] sm:$0xff] %vm614, %v592
      %626 = vst.msk [vmem:[%s170 + $0x58] sm:$0xff] %vm614, %v593
      %627 = vst.msk [vmem:[%s170 + $0x60] sm:$0xff] %vm614, %v594
      %628 = vst.msk [vmem:[%s170 + $0x68] sm:$0xff] %vm614, %v595
      %629 = vst.msk [vmem:[%s170 + $0x70] sm:$0xff] %vm614, %v596
      %630 = vst.msk [vmem:[%s170 + $0x78] sm:$0xff] %vm614, %v597
      %631 = vst.msk [vmem:[%s170 + $0x80] sm:$0xff] %vm614, %v598
      %632 = vst.msk [vmem:[%s170 + $0x88] sm:$0xff] %vm614, %v599
      %633 = vst.msk [vmem:[%s170 + $0x90] sm:$0xff] %vm614, %v600
      %634 = vst.msk [vmem:[%s170 + $0x98] sm:$0xff] %vm614, %v601
      %635 = vst.msk [vmem:[%s170 + $0xa0] sm:$0xff] %vm614, %v602
      %636 = vst.msk [vmem:[%s170 + $0xa8] sm:$0xff] %vm614, %v603
      %637 = vst.msk [vmem:[%s170 + $0xb0] sm:$0xff] %vm614, %v604
      %638 = vst.msk [vmem:[%s170 + $0xb8] sm:$0xff] %vm614, %v605
      %639 = vst.msk [vmem:[%s170 + $0xc0] sm:$0xff] %vm614, %v606
      %640 = vst.msk [vmem:[%s170 + $0xc8] sm:$0xff] %vm614, %v607
      %641 = vst.msk [vmem:[%s170 + $0xd0] sm:$0xff] %vm614, %v608
      %642 = vst.msk [vmem:[%s170 + $0xd8] sm:$0xff] %vm614, %v609
      %643 = vst.msk [vmem:[%s170 + $0xe0] sm:$0xff] %vm614, %v610
      %644 = vst.msk [vmem:[%s170 + $0xe8] sm:$0xff] %vm614, %v611
      %645 = vst.msk [vmem:[%s170 + $0xf0] sm:$0xff] %vm614, %v612
      %646 = vst.msk [vmem:[%s170 + $0xf8] sm:$0xff] %vm614, %v613
      %p647 = scmp.lt.s32.totalorder %s14, 1
      %s648 = scalar_select %p647, %s14, 1
      %s649 = smul.addr %s648, 32
      %s650 = smul.addr %s649, 8
      %s651 = scalar_lea.vmem %s3, %s650
      // Predicated region
      $region33: #{_forward.2} parent=31 // pred_check
        %p652 = pneg %p100
      $region34: #{_forward.2} parent=31 // pred_check_branch
        %654 = sbr.rel (%p652) target = $region36
      $region35: #{_forward.2} parent=31 // pred_region
        _
      $region36: #{_forward.2} parent=31 // pred_fallthru
        _
    $region32: #{_forward.2} parent=5 // pred_fallthru
      _
    %p655 = scmp.le.s32.totalorder 2, %s9
    // Predicated region
    $region37: #{_forward.2} parent=5 // pred_check
      %p656 = pneg %p655
    $region38: #{_forward.2} parent=5 // pred_check_branch
      %658 = sbr.rel (%p656) target = $region40
    $region39: #{_forward.2} parent=5 // pred_region
      %s659 = ssub.s32 %s9, 2
      // Predicated region
      $region41: #{_forward.2} parent=39 // pred_check
        %p660 = pneg %p106
      $region42: #{_forward.2} parent=39 // pred_check_branch
        %662 = sbr.rel (%p660) target = $region44
      $region43: #{_forward.2} parent=39 // pred_region
        %p663 = scmp.lt.s32.totalorder %s15, 1
        %s664 = scalar_select %p663, %s15, 1
        %s665 = smul.addr %s664, 32
        %s666 = smul.addr %s665, 8
        %s667 = scalar_lea.vmem %s3, %s666
      $region44: #{_forward.2} parent=39 // pred_fallthru
        _
    $region40: #{_forward.2} parent=5 // pred_fallthru
      _
  $region6: #{_forward.2} parent=0 // loop_footer
    %s13 = sadd.s32 1, %s9
  $region7: #{_forward.2} parent=0 // loop_footer_branch
    %8 = sbr.rel target = $region3
  $region8: #{_forward.2} parent=0 // loop_exit
    _

// kernel: _forward.3
$region0: #{_forward.3}
  #allocation0 [shape = 'u32[]', space=smem, size = 0x4, offset = 0x4, fixed_abs, tag = 'smem constant byte address 0x4 - core index']
  #allocation1 [shape = 'u32[144,128]{1,0:T(1,128)}', space=vmem, size = 0x12000, scoped, tag = 'internal scratch']
  %s0 = inlined_call_operand.vmem [shape: f32[2,256,288], index: 0, kind: input, shape index: {}]
  %s1 = inlined_call_operand.vmem [shape: f32[288,256], index: 1, kind: input, shape index: {}]
  %s2 = inlined_call_operand.vmem [shape: f32[1,256], index: 2, kind: input, shape index: {}]
  %s3 = inlined_call_operand.vmem [shape: f32[2,256,256], index: 3, kind: output, shape index: {}]
  %s4 = sld [smem:[#allocation0]]
  $region45: #{_forward.3} parent=0
    _
  %s6 = ssub.s32 1, %s4
  %s7 = scalar_select 0, %s6, %s4
  loop: start=0, step=1, limit=4
  $region2: #{_forward.3} parent=0 // loop_pre_header
    _
  $region3: #{_forward.3} parent=0 // loop_header
    %s9 = sphi 0, %s13
    %p10 = scmp.ge.s32.totalorder %s9, 4
    %s19 = sphi 0, %s21
    %s22 = sphi 0, %s19
    %s23 = sphi 0, %s22
    %s39 = sphi 0, %s23
    %s43 = sphi 0, %s43
    %s45 = sphi 0, %s43
    %s46 = sphi 0, %s45
    %s60 = sphi 0, %s46
    %s64 = sphi 0, %s64
    %s66 = sphi 0, %s64
    %s67 = sphi 0, %s66
    %s81 = sphi 0, %s67
    %s87 = sphi 0, %s89
    %s90 = sphi 0, %s87
    %s91 = sphi 0, %s90
    %s107 = sphi 0, %s91
  $region4: #{_forward.3} parent=0 // loop_header_branch
    %12 = sbr.rel (%p10) target = $region8
  $region5: #{_forward.3} parent=0 // loop_body
    %s14 = ssub.s32 %s9, 1
    %s15 = ssub.s32 %s9, 2
    %s16 = sadd.s32 %s9, 1
    %s17 = ssub.s32 %s9, %s16
    %p18 = scmp.eq.s32.totalorder %s17, 0
    %s20 = sadd.s32 %s19, 1
    %s21 = scalar_select %p18, %s19, %s20
    %p24 = pneg %p18
    %p25 = scmp.eq.s32.totalorder %s9, 1
    %p26 = por %p24, %p25
    %p27 = scmp.ne.s32.totalorder %s19, %s22
    %p28 = scmp.eq.s32.totalorder %s9, 0
    %p29 = por %p27, %p28
    %p30 = scmp.ne.s32.totalorder %s19, %s22
    %p31 = scmp.eq.s32.totalorder %s14, 1
    %p32 = por %p30, %p31
    %p33 = scmp.ne.s32.totalorder %s22, %s23
    %p34 = scmp.eq.s32.totalorder %s14, 0
    %p35 = por %p33, %p34
    %p36 = scmp.ne.s32.totalorder %s22, %s23
    %p37 = scmp.eq.s32.totalorder %s15, 1
    %p38 = por %p36, %p37
    %p40 = scmp.ne.s32.totalorder %s23, %s39
    %p41 = scmp.eq.s32.totalorder %s15, 0
    %p42 = por %p40, %p41
    %s44 = sadd.s32 %s43, 1
    %p47 = scmp.eq.s32.totalorder %s9, 1
    %p48 = scmp.ne.s32.totalorder %s43, %s45
    %p49 = scmp.eq.s32.totalorder %s9, 0
    %p50 = por %p48, %p49
    %p51 = scmp.ne.s32.totalorder %s43, %s45
    %p52 = scmp.eq.s32.totalorder %s14, 1
    %p53 = por %p51, %p52
    %p54 = scmp.ne.s32.totalorder %s45, %s46
    %p55 = scmp.eq.s32.totalorder %s14, 0
    %p56 = por %p54, %p55
    %p57 = scmp.ne.s32.totalorder %s45, %s46
    %p58 = scmp.eq.s32.totalorder %s15, 1
    %p59 = por %p57, %p58
    %p61 = scmp.ne.s32.totalorder %s46, %s60
    %p62 = scmp.eq.s32.totalorder %s15, 0
    %p63 = por %p61, %p62
    %s65 = sadd.s32 %s64, 1
    %p68 = scmp.eq.s32.totalorder %s9, 1
    %p69 = scmp.ne.s32.totalorder %s64, %s66
    %p70 = scmp.eq.s32.totalorder %s9, 0
    %p71 = por %p69, %p70
    %p72 = scmp.ne.s32.totalorder %s64, %s66
    %p73 = scmp.eq.s32.totalorder %s14, 1
    %p74 = por %p72, %p73
    %p75 = scmp.ne.s32.totalorder %s66, %s67
    %p76 = scmp.eq.s32.totalorder %s14, 0
    %p77 = por %p75, %p76
    %p78 = scmp.ne.s32.totalorder %s66, %s67
    %p79 = scmp.eq.s32.totalorder %s15, 1
    %p80 = por %p78, %p79
    %p82 = scmp.ne.s32.totalorder %s67, %s81
    %p83 = scmp.eq.s32.totalorder %s15, 0
    %p84 = por %p82, %p83
    %s85 = ssub.s32 %s9, %s16
    %p86 = scmp.eq.s32.totalorder %s85, 0
    %s88 = sadd.s32 %s87, 1
    %s89 = scalar_select %p86, %s87, %s88
    %p92 = pneg %p86
    %p93 = scmp.eq.s32.totalorder %s9, 1
    %p94 = por %p92, %p93
    %p95 = scmp.ne.s32.totalorder %s87, %s90
    %p96 = scmp.eq.s32.totalorder %s9, 0
    %p97 = por %p95, %p96
    %p98 = scmp.ne.s32.totalorder %s87, %s90
    %p99 = scmp.eq.s32.totalorder %s14, 1
    %p100 = por %p98, %p99
    %p101 = scmp.ne.s32.totalorder %s90, %s91
    %p102 = scmp.eq.s32.totalorder %s14, 0
    %p103 = por %p101, %p102
    %p104 = scmp.ne.s32.totalorder %s90, %s91
    %p105 = scmp.eq.s32.totalorder %s15, 1
    %p106 = por %p104, %p105
    %p108 = scmp.ne.s32.totalorder %s91, %s107
    %p109 = scmp.eq.s32.totalorder %s15, 0
    %p110 = por %p108, %p109
    %p111 = scmp.le.s32.totalorder 1, %s9
    %p112 = scmp.lt.s32.totalorder %s9, 3
    %p113 = pnand %p111, %p112
    %p114 = pneg %p113
    // Predicated region
    $region9: #{_forward.3} parent=5 // pred_check
      _
    $region10: #{_forward.3} parent=5 // pred_check_branch
      %116 = sbr.rel (%p113) target = $region12
    $region11: #{_forward.3} parent=5 // pred_region
      %s117 = ssub.s32 %s9, 1
      // Predicated region
      $region13: #{_forward.3} parent=11 // pred_check
        %p118 = pneg %p56
      $region14: #{_forward.3} parent=11 // pred_check_branch
        %120 = sbr.rel (%p118) target = $region16
      $region15: #{_forward.3} parent=11 // pred_region
        _
      $region16: #{_forward.3} parent=11 // pred_fallthru
        _
      // Predicated region
      $region17: #{_forward.3} parent=11 // pred_check
        %p121 = pneg %p77
      $region18: #{_forward.3} parent=11 // pred_check_branch
        %123 = sbr.rel (%p121) target = $region20
      $region19: #{_forward.3} parent=11 // pred_region
        _
      $region20: #{_forward.3} parent=11 // pred_fallthru
        _
    $region12: #{_forward.3} parent=5 // pred_fallthru
      _
    %p124 = scmp.lt.s32.totalorder %s9, 2
    // Predicated region
    $region21: #{_forward.3} parent=5 // pred_check
      %p125 = pneg %p124
    $region22: #{_forward.3} parent=5 // pred_check_branch
      %127 = sbr.rel (%p125) target = $region24
    $region23: #{_forward.3} parent=5 // pred_region
      // Predicated region
      $region25: #{_forward.3} parent=23 // pred_check
        %p128 = pneg %p29
      $region26: #{_forward.3} parent=23 // pred_check_branch
        %130 = sbr.rel (%p128) target = $region28
      $region27: #{_forward.3} parent=23 // pred_region
        %p131 = scmp.lt.s32.totalorder %s9, 1
        %s132 = scalar_select %p131, %s9, 1
        %s133 = smul.addr %s132, 96
        %s134 = smul.addr %s133, 8
        %s135 = scalar_lea.vmem %s0, %s134
      $region28: #{_forward.3} parent=23 // pred_fallthru
        _
    $region24: #{_forward.3} parent=5 // pred_fallthru
      _
    %p136 = scmp.le.s32.totalorder 1, %s9
    %p137 = scmp.lt.s32.totalorder %s9, 3
    %p138 = pnand %p136, %p137
    %p139 = pneg %p138
    // Predicated region
    $region29: #{_forward.3} parent=5 // pred_check
      _
    $region30: #{_forward.3} parent=5 // pred_check_branch
      %141 = sbr.rel (%p138) target = $region32
    $region31: #{_forward.3} parent=5 // pred_region
      %s142 = ssub.s32 %s9, 1
      %p143 = scmp.lt.s32.totalorder %s14, 1
      %s144 = scalar_select %p143, %s14, 1
      %s145 = smul.addr %s144, 96
      %s146 = smul.addr %s145, 8
      %s147 = scalar_lea.vmem %s0, %s146
      %p148 = pneg %p35
      %p149 = pneg %p32
      %p150 = pneg %p56
      %p151 = pneg %p53
      %p152 = pneg %p77
      %p153 = pneg %p74
      %p154 = pneg %p103
      %p155 = pneg %p100
      %p156 = scmp.lt.s32.totalorder %s14, 1
      %s157 = scalar_select %p156, %s14, 1
      %s158 = smul.addr %s157, 64
      %s159 = smul.addr %s158, 8
      %s160 = scalar_lea.vmem %s3, %s159
      %p161 = scmp.lt.s32.totalorder %s14, 1
      %s162 = scalar_select %p161, %s14, 1
      %s163 = smul.addr %s162, 96
      %s164 = smul.addr %s163, 8
      %s165 = scalar_lea.vmem %s0, %s164
      %p166 = scmp.lt.s32.totalorder %s14, 1
      %s167 = scalar_select %p166, %s14, 1
      %s168 = smul.addr %s167, 64
      %s169 = smul.addr %s168, 8
      %s170 = scalar_lea.vmem %s3, %s169
      %v171 = vld [vmem:[%s165] sm:$0xff]
      %v172 = vld [vmem:[%s165 + $0x8] sm:$0xff]
      %v173 = vld [vmem:[%s165 + $0x10] sm:$0xff]
      %v174 = vld [vmem:[%s165 + $0x18] sm:$0xff]
      %v175 = vld [vmem:[%s165 + $0x20] sm:$0xff]
      %v176 = vld [vmem:[%s165 + $0x28] sm:$0xff]
      %v177 = vld [vmem:[%s165 + $0x30] sm:$0xff]
      %v178 = vld [vmem:[%s165 + $0x38] sm:$0xff]
      %v179 = vld [vmem:[%s165 + $0x40] sm:$0xff]
      %v180 = vld [vmem:[%s165 + $0x48] sm:$0xff]
      %v181 = vld [vmem:[%s165 + $0x50] sm:$0xff]
      %v182 = vld [vmem:[%s165 + $0x58] sm:$0xff]
      %v183 = vld [vmem:[%s165 + $0x60] sm:$0xff]
      %v184 = vld [vmem:[%s165 + $0x68] sm:$0xff]
      %v185 = vld [vmem:[%s165 + $0x70] sm:$0xff]
      %v186 = vld [vmem:[%s165 + $0x78] sm:$0xff]
      %v187 = vld [vmem:[%s165 + $0x80] sm:$0xff]
      %v188 = vld [vmem:[%s165 + $0x88] sm:$0xff]
      %v189 = vld [vmem:[%s165 + $0x90] sm:$0xff]
      %v190 = vld [vmem:[%s165 + $0x98] sm:$0xff]
      %v191 = vld [vmem:[%s165 + $0xa0] sm:$0xff]
      %v192 = vld [vmem:[%s165 + $0xa8] sm:$0xff]
      %v193 = vld [vmem:[%s165 + $0xb0] sm:$0xff]
      %v194 = vld [vmem:[%s165 + $0xb8] sm:$0xff]
      %v195 = vld [vmem:[%s165 + $0xc0] sm:$0xff]
      %v196 = vld [vmem:[%s165 + $0xc8] sm:$0xff]
      %v197 = vld [vmem:[%s165 + $0xd0] sm:$0xff]
      %v198 = vld [vmem:[%s165 + $0xd8] sm:$0xff]
      %v199 = vld [vmem:[%s165 + $0xe0] sm:$0xff]
      %v200 = vld [vmem:[%s165 + $0xe8] sm:$0xff]
      %v201 = vld [vmem:[%s165 + $0xf0] sm:$0xff]
      %v202 = vld [vmem:[%s165 + $0xf8] sm:$0xff]
      %v203 = vld [vmem:[%s165 + $0x100] sm:$0xff]
      %v204 = vld [vmem:[%s165 + $0x108] sm:$0xff]
      %v205 = vld [vmem:[%s165 + $0x110] sm:$0xff]
      %v206 = vld [vmem:[%s165 + $0x118] sm:$0xff]
      %v207 = vld [vmem:[%s165 + $0x120] sm:$0xff]
      %v208 = vld [vmem:[%s165 + $0x128] sm:$0xff]
      %v209 = vld [vmem:[%s165 + $0x130] sm:$0xff]
      %v210 = vld [vmem:[%s165 + $0x138] sm:$0xff]
      %v211 = vld [vmem:[%s165 + $0x140] sm:$0xff]
      %v212 = vld [vmem:[%s165 + $0x148] sm:$0xff]
      %v213 = vld [vmem:[%s165 + $0x150] sm:$0xff]
      %v214 = vld [vmem:[%s165 + $0x158] sm:$0xff]
      %v215 = vld [vmem:[%s165 + $0x160] sm:$0xff]
      %v216 = vld [vmem:[%s165 + $0x168] sm:$0xff]
      %v217 = vld [vmem:[%s165 + $0x170] sm:$0xff]
      %v218 = vld [vmem:[%s165 + $0x178] sm:$0xff]
      %v219 = vld [vmem:[%s165 + $0x180] sm:$0xff]
      %v220 = vld [vmem:[%s165 + $0x188] sm:$0xff]
      %v221 = vld [vmem:[%s165 + $0x190] sm:$0xff]
      %v222 = vld [vmem:[%s165 + $0x198] sm:$0xff]
      %v223 = vld [vmem:[%s165 + $0x1a0] sm:$0xff]
      %v224 = vld [vmem:[%s165 + $0x1a8] sm:$0xff]
      %v225 = vld [vmem:[%s165 + $0x1b0] sm:$0xff]
      %v226 = vld [vmem:[%s165 + $0x1b8] sm:$0xff]
      %v227 = vld [vmem:[%s165 + $0x1c0] sm:$0xff]
      %v228 = vld [vmem:[%s165 + $0x1c8] sm:$0xff]
      %v229 = vld [vmem:[%s165 + $0x1d0] sm:$0xff]
      %v230 = vld [vmem:[%s165 + $0x1d8] sm:$0xff]
      %v231 = vld [vmem:[%s165 + $0x1e0] sm:$0xff]
      %v232 = vld [vmem:[%s165 + $0x1e8] sm:$0xff]
      %v233 = vld [vmem:[%s165 + $0x1f0] sm:$0xff]
      %v234 = vld [vmem:[%s165 + $0x1f8] sm:$0xff]
      %v235 = vld [vmem:[%s165 + $0x200] sm:$0xff]
      %v236 = vld [vmem:[%s165 + $0x208] sm:$0xff]
      %v237 = vld [vmem:[%s165 + $0x210] sm:$0xff]
      %v238 = vld [vmem:[%s165 + $0x218] sm:$0xff]
      %v239 = vld [vmem:[%s165 + $0x220] sm:$0xff]
      %v240 = vld [vmem:[%s165 + $0x228] sm:$0xff]
      %v241 = vld [vmem:[%s165 + $0x230] sm:$0xff]
      %v242 = vld [vmem:[%s165 + $0x238] sm:$0xff]
      %v243 = vld [vmem:[%s165 + $0x240] sm:$0xff]
      %v244 = vld [vmem:[%s165 + $0x248] sm:$0xff]
      %v245 = vld [vmem:[%s165 + $0x250] sm:$0xff]
      %v246 = vld [vmem:[%s165 + $0x258] sm:$0xff]
      %v247 = vld [vmem:[%s165 + $0x260] sm:$0xff]
      %v248 = vld [vmem:[%s165 + $0x268] sm:$0xff]
      %v249 = vld [vmem:[%s165 + $0x270] sm:$0xff]
      %v250 = vld [vmem:[%s165 + $0x278] sm:$0xff]
      %v251 = vld [vmem:[%s165 + $0x280] sm:$0xff]
      %v252 = vld [vmem:[%s165 + $0x288] sm:$0xff]
      %v253 = vld [vmem:[%s165 + $0x290] sm:$0xff]
      %v254 = vld [vmem:[%s165 + $0x298] sm:$0xff]
      %v255 = vld [vmem:[%s165 + $0x2a0] sm:$0xff]
      %v256 = vld [vmem:[%s165 + $0x2a8] sm:$0xff]
      %v257 = vld [vmem:[%s165 + $0x2b0] sm:$0xff]
      %v258 = vld [vmem:[%s165 + $0x2b8] sm:$0xff]
      %v259 = vld [vmem:[%s165 + $0x2c0] sm:$0xff]
      %v260 = vld [vmem:[%s165 + $0x2c8] sm:$0xff]
      %v261 = vld [vmem:[%s165 + $0x2d0] sm:$0xff]
      %v262 = vld [vmem:[%s165 + $0x2d8] sm:$0xff]
      %v263 = vld [vmem:[%s165 + $0x2e0] sm:$0xff]
      %v264 = vld [vmem:[%s165 + $0x2e8] sm:$0xff]
      %v265 = vld [vmem:[%s165 + $0x2f0] sm:$0xff]
      %v266 = vld [vmem:[%s165 + $0x2f8] sm:$0xff]
      %v267 = vld [vmem:[%s1] sm:$0xff]
      %v268 = vld [vmem:[%s1 + $0x8] sm:$0xff]
      %v269 = vld [vmem:[%s1 + $0x10] sm:$0xff]
      %v270 = vld [vmem:[%s1 + $0x18] sm:$0xff]
      %v271 = vld [vmem:[%s1 + $0x20] sm:$0xff]
      %v272 = vld [vmem:[%s1 + $0x28] sm:$0xff]
      %v273 = vld [vmem:[%s1 + $0x30] sm:$0xff]
      %v274 = vld [vmem:[%s1 + $0x38] sm:$0xff]
      %v275 = vld [vmem:[%s1 + $0x40] sm:$0xff]
      %v276 = vld [vmem:[%s1 + $0x48] sm:$0xff]
      %v277 = vld [vmem:[%s1 + $0x50] sm:$0xff]
      %v278 = vld [vmem:[%s1 + $0x58] sm:$0xff]
      %v279 = vld [vmem:[%s1 + $0x60] sm:$0xff]
      %v280 = vld [vmem:[%s1 + $0x68] sm:$0xff]
      %v281 = vld [vmem:[%s1 + $0x70] sm:$0xff]
      %v282 = vld [vmem:[%s1 + $0x78] sm:$0xff]
      %v283 = vld [vmem:[%s1 + $0x80] sm:$0xff]
      %v284 = vld [vmem:[%s1 + $0x88] sm:$0xff]
      %v285 = vld [vmem:[%s1 + $0x90] sm:$0xff]
      %v286 = vld [vmem:[%s1 + $0x98] sm:$0xff]
      %v287 = vld [vmem:[%s1 + $0xa0] sm:$0xff]
      %v288 = vld [vmem:[%s1 + $0xa8] sm:$0xff]
      %v289 = vld [vmem:[%s1 + $0xb0] sm:$0xff]
      %v290 = vld [vmem:[%s1 + $0xb8] sm:$0xff]
      %v291 = vld [vmem:[%s1 + $0xc0] sm:$0xff]
      %v292 = vld [vmem:[%s1 + $0xc8] sm:$0xff]
      %v293 = vld [vmem:[%s1 + $0xd0] sm:$0xff]
      %v294 = vld [vmem:[%s1 + $0xd8] sm:$0xff]
      %v295 = vld [vmem:[%s1 + $0xe0] sm:$0xff]
      %v296 = vld [vmem:[%s1 + $0xe8] sm:$0xff]
      %v297 = vld [vmem:[%s1 + $0xf0] sm:$0xff]
      %v298 = vld [vmem:[%s1 + $0xf8] sm:$0xff]
      %v299 = vld [vmem:[%s1 + $0x100] sm:$0xff]
      %v300 = vld [vmem:[%s1 + $0x108] sm:$0xff]
      %v301 = vld [vmem:[%s1 + $0x110] sm:$0xff]
      %v302 = vld [vmem:[%s1 + $0x118] sm:$0xff]
      %v303 = vld [vmem:[%s1 + $0x120] sm:$0xff]
      %v304 = vld [vmem:[%s1 + $0x128] sm:$0xff]
      %v305 = vld [vmem:[%s1 + $0x130] sm:$0xff]
      %v306 = vld [vmem:[%s1 + $0x138] sm:$0xff]
      %v307 = vld [vmem:[%s1 + $0x140] sm:$0xff]
      %v308 = vld [vmem:[%s1 + $0x148] sm:$0xff]
      %v309 = vld [vmem:[%s1 + $0x150] sm:$0xff]
      %v310 = vld [vmem:[%s1 + $0x158] sm:$0xff]
      %v311 = vld [vmem:[%s1 + $0x160] sm:$0xff]
      %v312 = vld [vmem:[%s1 + $0x168] sm:$0xff]
      %v313 = vld [vmem:[%s1 + $0x170] sm:$0xff]
      %v314 = vld [vmem:[%s1 + $0x178] sm:$0xff]
      %v315 = vld [vmem:[%s1 + $0x180] sm:$0xff]
      %v316 = vld [vmem:[%s1 + $0x188] sm:$0xff]
      %v317 = vld [vmem:[%s1 + $0x190] sm:$0xff]
      %v318 = vld [vmem:[%s1 + $0x198] sm:$0xff]
      %v319 = vld [vmem:[%s1 + $0x1a0] sm:$0xff]
      %v320 = vld [vmem:[%s1 + $0x1a8] sm:$0xff]
      %v321 = vld [vmem:[%s1 + $0x1b0] sm:$0xff]
      %v322 = vld [vmem:[%s1 + $0x1b8] sm:$0xff]
      %v323 = vld [vmem:[%s1 + $0x1c0] sm:$0xff]
      %v324 = vld [vmem:[%s1 + $0x1c8] sm:$0xff]
      %v325 = vld [vmem:[%s1 + $0x1d0] sm:$0xff]
      %v326 = vld [vmem:[%s1 + $0x1d8] sm:$0xff]
      %v327 = vld [vmem:[%s1 + $0x1e0] sm:$0xff]
      %v328 = vld [vmem:[%s1 + $0x1e8] sm:$0xff]
      %v329 = vld [vmem:[%s1 + $0x1f0] sm:$0xff]
      %v330 = vld [vmem:[%s1 + $0x1f8] sm:$0xff]
      %v331 = vld [vmem:[%s1 + $0x200] sm:$0xff]
      %v332 = vld [vmem:[%s1 + $0x208] sm:$0xff]
      %v333 = vld [vmem:[%s1 + $0x210] sm:$0xff]
      %v334 = vld [vmem:[%s1 + $0x218] sm:$0xff]
      %v335 = vld [vmem:[%s1 + $0x220] sm:$0xff]
      %v336 = vld [vmem:[%s1 + $0x228] sm:$0xff]
      %v337 = vld [vmem:[%s1 + $0x230] sm:$0xff]
      %v338 = vld [vmem:[%s1 + $0x238] sm:$0xff]
      %v339 = vld [vmem:[%s2] sm:$0x3]
      %v341 = vlaneseq
      %v342 = vshrl.u32 %v341, 7
      %v343 = vsub.s32 0, %v342
      %v344 = vrot.slane %v339, %v343
      %v345 = vlaneseq
      %v346 = vshrl.u32 %v345, 7
      %v347 = vsub.s32 1, %v346
      %v348 = vrot.slane %v339, %v347
      %vm351 = vcmask 261120
      %v353 = vsel %vm351, %v173, 0
      %v356 = vsel %vm351, %v176, 0
      %v359 = vsel %vm351, %v179, 0
      %v362 = vsel %vm351, %v182, 0
      %v365 = vsel %vm351, %v185, 0
      %v368 = vsel %vm351, %v188, 0
      %v371 = vsel %vm351, %v191, 0
      %v374 = vsel %vm351, %v194, 0
      %v377 = vsel %vm351, %v197, 0
      %v380 = vsel %vm351, %v200, 0
      %v383 = vsel %vm351, %v203, 0
      %v386 = vsel %vm351, %v206, 0
      %v389 = vsel %vm351, %v209, 0
      %v392 = vsel %vm351, %v212, 0
      %v395 = vsel %vm351, %v215, 0
      %v398 = vsel %vm351, %v218, 0
      %v401 = vsel %vm351, %v221, 0
      %v404 = vsel %vm351, %v224, 0
      %v407 = vsel %vm351, %v227, 0
      %v410 = vsel %vm351, %v230, 0
      %v413 = vsel %vm351, %v233, 0
      %v416 = vsel %vm351, %v236, 0
      %v419 = vsel %vm351, %v239, 0
      %v422 = vsel %vm351, %v242, 0
      %v425 = vsel %vm351, %v245, 0
      %v428 = vsel %vm351, %v248, 0
      %v431 = vsel %vm351, %v251, 0
      %v434 = vsel %vm351, %v254, 0
      %v437 = vsel %vm351, %v257, 0
      %v440 = vsel %vm351, %v260, 0
      %v443 = vsel %vm351, %v263, 0
      %v446 = vsel %vm351, %v266, 0
      %448 = vmatprep.subr.mxu0 %v298
      %449 = vmatpush1.msra.mxu0 %v297
      %450 = vmatprep.subr.mxu0 %v296
      %451 = vmatpush1.msra.mxu0 %v295
      %452 = vmatprep.subr.mxu0 %v294
      %453 = vmatpush1.msra.mxu0 %v293
      %454 = vmatprep.subr.mxu0 %v292
      %455 = vmatpush1.msra.mxu0 %v291
      %456 = vmatprep.subr.mxu0 %v290
      %457 = vmatpush1.msra.mxu0 %v289
      %458 = vmatprep.subr.mxu0 %v288
      %459 = vmatpush1.msra.mxu0 %v287
      %460 = vmatprep.subr.mxu0 %v286
      %461 = vmatpush1.msra.mxu0 %v285
      %462 = vmatprep.subr.mxu0 %v284
      %463 = vmatpush1.msra.mxu0 %v283
      %464 = vmatprep.subr.mxu0 %v282
      %465 = vmatpush1.msra.mxu0 %v281
      %466 = vmatprep.subr.mxu0 %v280
      %467 = vmatpush1.msra.mxu0 %v279
      %468 = vmatprep.subr.mxu0 %v278
      %469 = vmatpush1.msra.mxu0 %v277
      %470 = vmatprep.subr.mxu0 %v276
      %471 = vmatpush1.msra.mxu0 %v275
      %472 = vmatprep.subr.mxu0 %v274
      %473 = vmatpush1.msra.mxu0 %v273
      %474 = vmatprep.subr.mxu0 %v272
      %475 = vmatpush1.msra.mxu0 %v271
      %476 = vmatprep.subr.mxu0 %v270
      %477 = vmatpush1.msra.mxu0 %v269
      %478 = vmatprep.subr.mxu0 %v268
      %479 = vmatpush1.msra.mxu0 %v267
      %480 = vmatprep.subr.mxu0 %v330
      %481 = vmatpush2.msra.mxu0 %v329
      %482 = vmatprep.subr.mxu0 %v328
      %483 = vmatpush2.msra.mxu0 %v327
      %484 = vmatprep.subr.mxu0 %v326
      %485 = vmatpush2.msra.mxu0 %v325
      %486 = vmatprep.subr.mxu0 %v324
      %487 = vmatpush2.msra.mxu0 %v323
      %488 = vmatprep.subr.mxu0 %v322
      %489 = vmatpush2.msra.mxu0 %v321
      %490 = vmatprep.subr.mxu0 %v320
      %491 = vmatpush2.msra.mxu0 %v319
      %492 = vmatprep.subr.mxu0 %v318
      %493 = vmatpush2.msra.mxu0 %v317
      %494 = vmatprep.subr.mxu0 %v316
      %495 = vmatpush2.msra.mxu0 %v315
      %496 = vmatprep.subr.mxu0 %v314
      %497 = vmatpush2.msra.mxu0 %v313
      %498 = vmatprep.subr.mxu0 %v312
      %499 = vmatpush2.msra.mxu0 %v311
      %500 = vmatprep.subr.mxu0 %v310
      %501 = vmatpush2.msra.mxu0 %v309
      %502 = vmatprep.subr.mxu0 %v308
      %503 = vmatpush2.msra.mxu0 %v307
      %504 = vmatprep.subr.mxu0 %v306
      %505 = vmatpush2.msra.mxu0 %v305
      %506 = vmatprep.subr.mxu0 %v304
      %507 = vmatpush2.msra.mxu0 %v303
      %508 = vmatprep.subr.mxu0 %v302
      %509 = vmatpush2.msra.mxu0 %v301
      %510 = vmatprep.subr.mxu0 %v300
      %511 = vmatpush2.msra.mxu0 %v299
      %512 = vmatprep.mubr.f32.mxu0 %v172
      %513 = vmatmul.mubr.f32.gmra.mxu0 %v171
      %v514 = vpop.f32.mrf.mxu0
      %v515 = vadd.f32 %v344, %v514
      %v516 = vpop.f32.mrf.mxu0
      %v517 = vadd.f32 %v348, %v516
      %518 = vmatprep.mubr.f32.mxu0 %v175
      %519 = vmatmul.mubr.f32.gmra.mxu0 %v174
      %v520 = vpop.f32.mrf.mxu0
      %v521 = vadd.f32 %v344, %v520
      %v522 = vpop.f32.mrf.mxu0
      %v523 = vadd.f32 %v348, %v522
      %524 = vmatprep.mubr.f32.mxu0 %v178
      %525 = vmatmul.mubr.f32.gmra.mxu0 %v177
      %v526 = vpop.f32.mrf.mxu0
      %v527 = vadd.f32 %v344, %v526
      %v528 = vpop.f32.mrf.mxu0
      %v529 = vadd.f32 %v348, %v528
      %530 = vmatprep.mubr.f32.mxu0 %v181
      %531 = vmatmul.mubr.f32.gmra.mxu0 %v180
      %v532 = vpop.f32.mrf.mxu0
      %v533 = vadd.f32 %v344, %v532
      %v534 = vpop.f32.mrf.mxu0
      %v535 = vadd.f32 %v348, %v534
      %536 = vmatprep.mubr.f32.mxu0 %v184
      %537 = vmatmul.mubr.f32.gmra.mxu0 %v183
      %v538 = vpop.f32.mrf.mxu0
      %v539 = vadd.f32 %v344, %v538
      %v540 = vpop.f32.mrf.mxu0
      %v541 = vadd.f32 %v348, %v540
      %542 = vmatprep.mubr.f32.mxu0 %v187
      %543 = vmatmul.mubr.f32.gmra.mxu0 %v186
      %v544 = vpop.f32.mrf.mxu0
      %v545 = vadd.f32 %v344, %v544
      %v546 = vpop.f32.mrf.mxu0
      %v547 = vadd.f32 %v348, %v546
      %548 = vmatprep.mubr.f32.mxu0 %v190
      %549 = vmatmul.mubr.f32.gmra.mxu0 %v189
      %v550 = vpop.f32.mrf.mxu0
      %v551 = vadd.f32 %v344, %v550
      %v552 = vpop.f32.mrf.mxu0
      %v553 = vadd.f32 %v348, %v552
      %554 = vmatprep.mubr.f32.mxu0 %v193
      %555 = vmatmul.mubr.f32.gmra.mxu0 %v192
      %v556 = vpop.f32.mrf.mxu0
      %v557 = vadd.f32 %v344, %v556
      %v558 = vpop.f32.mrf.mxu0
      %v559 = vadd.f32 %v348, %v558
      %560 = vmatprep.mubr.f32.mxu0 %v196
      %561 = vmatmul.mubr.f32.gmra.mxu0 %v195
      %v562 = vpop.f32.mrf.mxu0
      %v563 = vadd.f32 %v344, %v562
      %v564 = vpop.f32.mrf.mxu0
      %v565 = vadd.f32 %v348, %v564
      %566 = vmatprep.mubr.f32.mxu0 %v199
      %567 = vmatmul.mubr.f32.gmra.mxu0 %v198
      %v568 = vpop.f32.mrf.mxu0
      %v569 = vadd.f32 %v344, %v568
      %v570 = vpop.f32.mrf.mxu0
      %v571 = vadd.f32 %v348, %v570
      %572 = vmatprep.mubr.f32.mxu0 %v202
      %573 = vmatmul.mubr.f32.gmra.mxu0 %v201
      %v574 = vpop.f32.mrf.mxu0
      %v575 = vadd.f32 %v344, %v574
      %v576 = vpop.f32.mrf.mxu0
      %v577 = vadd.f32 %v348, %v576
      %578 = vmatprep.mubr.f32.mxu0 %v205
      %579 = vmatmul.mubr.f32.gmra.mxu0 %v204
      %v580 = vpop.f32.mrf.mxu0
      %v581 = vadd.f32 %v344, %v580
      %v582 = vpop.f32.mrf.mxu0
      %v583 = vadd.f32 %v348, %v582
      %584 = vmatprep.mubr.f32.mxu0 %v208
      %585 = vmatmul.mubr.f32.gmra.mxu0 %v207
      %v586 = vpop.f32.mrf.mxu0
      %v587 = vadd.f32 %v344, %v586
      %v588 = vpop.f32.mrf.mxu0
      %v589 = vadd.f32 %v348, %v588
      %590 = vmatprep.mubr.f32.mxu0 %v211
      %591 = vmatmul.mubr.f32.gmra.mxu0 %v210
      %v592 = vpop.f32.mrf.mxu0
      %v593 = vadd.f32 %v344, %v592
      %v594 = vpop.f32.mrf.mxu0
      %v595 = vadd.f32 %v348, %v594
      %596 = vmatprep.mubr.f32.mxu0 %v214
      %597 = vmatmul.mubr.f32.gmra.mxu0 %v213
      %v598 = vpop.f32.mrf.mxu0
      %v599 = vadd.f32 %v344, %v598
      %v600 = vpop.f32.mrf.mxu0
      %v601 = vadd.f32 %v348, %v600
      %602 = vmatprep.mubr.f32.mxu0 %v217
      %603 = vmatmul.mubr.f32.gmra.mxu0 %v216
      %v604 = vpop.f32.mrf.mxu0
      %v605 = vadd.f32 %v344, %v604
      %v606 = vpop.f32.mrf.mxu0
      %v607 = vadd.f32 %v348, %v606
      %608 = vmatprep.mubr.f32.mxu0 %v220
      %609 = vmatmul.mubr.f32.gmra.mxu0 %v219
      %v610 = vpop.f32.mrf.mxu0
      %v611 = vadd.f32 %v344, %v610
      %v612 = vpop.f32.mrf.mxu0
      %v613 = vadd.f32 %v348, %v612
      %614 = vmatprep.mubr.f32.mxu0 %v223
      %615 = vmatmul.mubr.f32.gmra.mxu0 %v222
      %v616 = vpop.f32.mrf.mxu0
      %v617 = vadd.f32 %v344, %v616
      %v618 = vpop.f32.mrf.mxu0
      %v619 = vadd.f32 %v348, %v618
      %620 = vmatprep.mubr.f32.mxu0 %v226
      %621 = vmatmul.mubr.f32.gmra.mxu0 %v225
      %v622 = vpop.f32.mrf.mxu0
      %v623 = vadd.f32 %v344, %v622
      %v624 = vpop.f32.mrf.mxu0
      %v625 = vadd.f32 %v348, %v624
      %626 = vmatprep.mubr.f32.mxu0 %v229
      %627 = vmatmul.mubr.f32.gmra.mxu0 %v228
      %v628 = vpop.f32.mrf.mxu0
      %v629 = vadd.f32 %v344, %v628
      %v630 = vpop.f32.mrf.mxu0
      %v631 = vadd.f32 %v348, %v630
      %632 = vmatprep.mubr.f32.mxu0 %v232
      %633 = vmatmul.mubr.f32.gmra.mxu0 %v231
      %v634 = vpop.f32.mrf.mxu0
      %v635 = vadd.f32 %v344, %v634
      %v636 = vpop.f32.mrf.mxu0
      %v637 = vadd.f32 %v348, %v636
      %638 = vmatprep.mubr.f32.mxu0 %v235
      %639 = vmatmul.mubr.f32.gmra.mxu0 %v234
      %v640 = vpop.f32.mrf.mxu0
      %v641 = vadd.f32 %v344, %v640
      %v642 = vpop.f32.mrf.mxu0
      %v643 = vadd.f32 %v348, %v642
      %644 = vmatprep.mubr.f32.mxu0 %v238
      %645 = vmatmul.mubr.f32.gmra.mxu0 %v237
      %v646 = vpop.f32.mrf.mxu0
      %v647 = vadd.f32 %v344, %v646
      %v648 = vpop.f32.mrf.mxu0
      %v649 = vadd.f32 %v348, %v648
      %650 = vmatprep.mubr.f32.mxu0 %v241
      %651 = vmatmul.mubr.f32.gmra.mxu0 %v240
      %v652 = vpop.f32.mrf.mxu0
      %v653 = vadd.f32 %v344, %v652
      %v654 = vpop.f32.mrf.mxu0
      %v655 = vadd.f32 %v348, %v654
      %656 = vmatprep.mubr.f32.mxu0 %v244
      %657 = vmatmul.mubr.f32.gmra.mxu0 %v243
      %v658 = vpop.f32.mrf.mxu0
      %v659 = vadd.f32 %v344, %v658
      %v660 = vpop.f32.mrf.mxu0
      %v661 = vadd.f32 %v348, %v660
      %662 = vmatprep.mubr.f32.mxu0 %v247
      %663 = vmatmul.mubr.f32.gmra.mxu0 %v246
      %v664 = vpop.f32.mrf.mxu0
      %v665 = vadd.f32 %v344, %v664
      %v666 = vpop.f32.mrf.mxu0
      %v667 = vadd.f32 %v348, %v666
      %668 = vmatprep.mubr.f32.mxu0 %v250
      %669 = vmatmul.mubr.f32.gmra.mxu0 %v249
      %v670 = vpop.f32.mrf.mxu0
      %v671 = vadd.f32 %v344, %v670
      %v672 = vpop.f32.mrf.mxu0
      %v673 = vadd.f32 %v348, %v672
      %674 = vmatprep.mubr.f32.mxu0 %v253
      %675 = vmatmul.mubr.f32.gmra.mxu0 %v252
      %v676 = vpop.f32.mrf.mxu0
      %v677 = vadd.f32 %v344, %v676
      %v678 = vpop.f32.mrf.mxu0
      %v679 = vadd.f32 %v348, %v678
      %680 = vmatprep.mubr.f32.mxu0 %v256
      %681 = vmatmul.mubr.f32.gmra.mxu0 %v255
      %v682 = vpop.f32.mrf.mxu0
      %v683 = vadd.f32 %v344, %v682
      %v684 = vpop.f32.mrf.mxu0
      %v685 = vadd.f32 %v348, %v684
      %686 = vmatprep.mubr.f32.mxu0 %v259
      %687 = vmatmul.mubr.f32.gmra.mxu0 %v258
      %v688 = vpop.f32.mrf.mxu0
      %v689 = vadd.f32 %v344, %v688
      %v690 = vpop.f32.mrf.mxu0
      %v691 = vadd.f32 %v348, %v690
      %692 = vmatprep.mubr.f32.mxu0 %v262
      %693 = vmatmul.mubr.f32.gmra.mxu0 %v261
      %v694 = vpop.f32.mrf.mxu0
      %v695 = vadd.f32 %v344, %v694
      %v696 = vpop.f32.mrf.mxu0
      %v697 = vadd.f32 %v348, %v696
      %698 = vmatprep.mubr.f32.mxu0 %v265
      %699 = vmatmul.mubr.f32.gmra.mxu0 %v264
      %v700 = vpop.f32.mrf.mxu0
      %v701 = vadd.f32 %v344, %v700
      %v702 = vpop.f32.mrf.mxu0
      %v703 = vadd.f32 %v348, %v702
      %704 = vdwg.mxu0
      %705 = vmatprep.subr.mxu0 0.0
      %706 = vmatpush1.msra.mxu0 0.0
      %707 = vmatprep.subr.mxu0 0.0
      %708 = vmatpush1.msra.mxu0 0.0
      %709 = vmatprep.subr.mxu0 0.0
      %710 = vmatpush1.msra.mxu0 0.0
      %711 = vmatprep.subr.mxu0 0.0
      %712 = vmatpush1.msra.mxu0 0.0
      %713 = vmatprep.subr.mxu0 0.0
      %714 = vmatpush1.msra.mxu0 0.0
      %715 = vmatprep.subr.mxu0 0.0
      %716 = vmatpush1.msra.mxu0 0.0
      %717 = vmatprep.subr.mxu0 0.0
      %718 = vmatpush1.msra.mxu0 0.0
      %719 = vmatprep.subr.mxu0 0.0
      %720 = vmatpush1.msra.mxu0 0.0
      %721 = vmatprep.subr.mxu0 0.0
      %722 = vmatpush1.msra.mxu0 0.0
      %723 = vmatprep.subr.mxu0 0.0
      %724 = vmatpush1.msra.mxu0 0.0
      %725 = vmatprep.subr.mxu0 0.0
      %726 = vmatpush1.msra.mxu0 0.0
      %727 = vmatprep.subr.mxu0 0.0
      %728 = vmatpush1.msra.mxu0 0.0
      %729 = vmatprep.subr.mxu0 %v338
      %730 = vmatpush1.msra.mxu0 %v337
      %731 = vmatprep.subr.mxu0 %v336
      %732 = vmatpush1.msra.mxu0 %v335
      %733 = vmatprep.subr.mxu0 %v334
      %734 = vmatpush1.msra.mxu0 %v333
      %735 = vmatprep.subr.mxu0 %v332
      %736 = vmatpush1.msra.mxu0 %v331
      %737 = vmatprep.subr.mxu0 0.0
      %738 = vmatpush2.msra.mxu0 0.0
      %739 = vmatprep.subr.mxu0 0.0
      %740 = vmatpush2.msra.mxu0 0.0
      %741 = vmatprep.subr.mxu0 0.0
      %742 = vmatpush2.msra.mxu0 0.0
      %743 = vmatprep.subr.mxu0 0.0
      %744 = vmatpush2.msra.mxu0 0.0
      %745 = vmatprep.subr.mxu0 0.0
      %746 = vmatpush2.msra.mxu0 0.0
      %747 = vmatprep.subr.mxu0 0.0
      %748 = vmatpush2.msra.mxu0 0.0
      %749 = vmatprep.subr.mxu0 0.0
      %750 = vmatpush2.msra.mxu0 0.0
      %751 = vmatprep.subr.mxu0 0.0
      %752 = vmatpush2.msra.mxu0 0.0
      %753 = vmatprep.subr.mxu0 0.0
      %754 = vmatpush2.msra.mxu0 0.0
      %755 = vmatprep.subr.mxu0 0.0
      %756 = vmatpush2.msra.mxu0 0.0
      %757 = vmatprep.subr.mxu0 0.0
      %758 = vmatpush2.msra.mxu0 0.0
      %759 = vmatprep.subr.mxu0 0.0
      %760 = vmatpush2.msra.mxu0 0.0
      %761 = vmatprep.subr.mxu0 0.0
      %762 = vmatpush2.msra.mxu0 0.0
      %763 = vmatprep.subr.mxu0 0.0
      %764 = vmatpush2.msra.mxu0 0.0
      %765 = vmatprep.subr.mxu0 0.0
      %766 = vmatpush2.msra.mxu0 0.0
      %767 = vmatprep.subr.mxu0 0.0
      %768 = vmatpush2.msra.mxu0 0.0
      %769 = vmatprep.mubr.f32.mxu0 0.0
      %770 = vmatmul.mubr.f32.gmra.mxu0 %v353
      %v771 = vpop.f32.mrf.mxu0
      %v772 = vadd.f32 %v515, %v771
      %v773 = vpop.f32.mrf.mxu0
      %v774 = vadd.f32 %v517, %v773
      %775 = vmatprep.mubr.f32.mxu0 0.0
      %776 = vmatmul.mubr.f32.gmra.mxu0 %v356
      %v777 = vpop.f32.mrf.mxu0
      %v778 = vadd.f32 %v521, %v777
      %v779 = vpop.f32.mrf.mxu0
      %v780 = vadd.f32 %v523, %v779
      %781 = vmatprep.mubr.f32.mxu0 0.0
      %782 = vmatmul.mubr.f32.gmra.mxu0 %v359
      %v783 = vpop.f32.mrf.mxu0
      %v784 = vadd.f32 %v527, %v783
      %v785 = vpop.f32.mrf.mxu0
      %v786 = vadd.f32 %v529, %v785
      %787 = vmatprep.mubr.f32.mxu0 0.0
      %788 = vmatmul.mubr.f32.gmra.mxu0 %v362
      %v789 = vpop.f32.mrf.mxu0
      %v790 = vadd.f32 %v533, %v789
      %v791 = vpop.f32.mrf.mxu0
      %v792 = vadd.f32 %v535, %v791
      %793 = vmatprep.mubr.f32.mxu0 0.0
      %794 = vmatmul.mubr.f32.gmra.mxu0 %v365
      %v795 = vpop.f32.mrf.mxu0
      %v796 = vadd.f32 %v539, %v795
      %v797 = vpop.f32.mrf.mxu0
      %v798 = vadd.f32 %v541, %v797
      %799 = vmatprep.mubr.f32.mxu0 0.0
      %800 = vmatmul.mubr.f32.gmra.mxu0 %v368
      %v801 = vpop.f32.mrf.mxu0
      %v802 = vadd.f32 %v545, %v801
      %v803 = vpop.f32.mrf.mxu0
      %v804 = vadd.f32 %v547, %v803
      %805 = vmatprep.mubr.f32.mxu0 0.0
      %806 = vmatmul.mubr.f32.gmra.mxu0 %v371
      %v807 = vpop.f32.mrf.mxu0
      %v808 = vadd.f32 %v551, %v807
      %v809 = vpop.f32.mrf.mxu0
      %v810 = vadd.f32 %v553, %v809
      %811 = vmatprep.mubr.f32.mxu0 0.0
      %812 = vmatmul.mubr.f32.gmra.mxu0 %v374
      %v813 = vpop.f32.mrf.mxu0
      %v814 = vadd.f32 %v557, %v813
      %v815 = vpop.f32.mrf.mxu0
      %v816 = vadd.f32 %v559, %v815
      %817 = vmatprep.mubr.f32.mxu0 0.0
      %818 = vmatmul.mubr.f32.gmra.mxu0 %v377
      %v819 = vpop.f32.mrf.mxu0
      %v820 = vadd.f32 %v563, %v819
      %v821 = vpop.f32.mrf.mxu0
      %v822 = vadd.f32 %v565, %v821
      %823 = vmatprep.mubr.f32.mxu0 0.0
      %824 = vmatmul.mubr.f32.gmra.mxu0 %v380
      %v825 = vpop.f32.mrf.mxu0
      %v826 = vadd.f32 %v569, %v825
      %v827 = vpop.f32.mrf.mxu0
      %v828 = vadd.f32 %v571, %v827
      %829 = vmatprep.mubr.f32.mxu0 0.0
      %830 = vmatmul.mubr.f32.gmra.mxu0 %v383
      %v831 = vpop.f32.mrf.mxu0
      %v832 = vadd.f32 %v575, %v831
      %v833 = vpop.f32.mrf.mxu0
      %v834 = vadd.f32 %v577, %v833
      %835 = vmatprep.mubr.f32.mxu0 0.0
      %836 = vmatmul.mubr.f32.gmra.mxu0 %v386
      %v837 = vpop.f32.mrf.mxu0
      %v838 = vadd.f32 %v581, %v837
      %v839 = vpop.f32.mrf.mxu0
      %v840 = vadd.f32 %v583, %v839
      %841 = vmatprep.mubr.f32.mxu0 0.0
      %842 = vmatmul.mubr.f32.gmra.mxu0 %v389
      %v843 = vpop.f32.mrf.mxu0
      %v844 = vadd.f32 %v587, %v843
      %v845 = vpop.f32.mrf.mxu0
      %v846 = vadd.f32 %v589, %v845
      %847 = vmatprep.mubr.f32.mxu0 0.0
      %848 = vmatmul.mubr.f32.gmra.mxu0 %v392
      %v849 = vpop.f32.mrf.mxu0
      %v850 = vadd.f32 %v593, %v849
      %v851 = vpop.f32.mrf.mxu0
      %v852 = vadd.f32 %v595, %v851
      %853 = vmatprep.mubr.f32.mxu0 0.0
      %854 = vmatmul.mubr.f32.gmra.mxu0 %v395
      %v855 = vpop.f32.mrf.mxu0
      %v856 = vadd.f32 %v599, %v855
      %v857 = vpop.f32.mrf.mxu0
      %v858 = vadd.f32 %v601, %v857
      %859 = vmatprep.mubr.f32.mxu0 0.0
      %860 = vmatmul.mubr.f32.gmra.mxu0 %v398
      %v861 = vpop.f32.mrf.mxu0
      %v862 = vadd.f32 %v605, %v861
      %v863 = vpop.f32.mrf.mxu0
      %v864 = vadd.f32 %v607, %v863
      %865 = vmatprep.mubr.f32.mxu0 0.0
      %866 = vmatmul.mubr.f32.gmra.mxu0 %v401
      %v867 = vpop.f32.mrf.mxu0
      %v868 = vadd.f32 %v611, %v867
      %v869 = vpop.f32.mrf.mxu0
      %v870 = vadd.f32 %v613, %v869
      %871 = vmatprep.mubr.f32.mxu0 0.0
      %872 = vmatmul.mubr.f32.gmra.mxu0 %v404
      %v873 = vpop.f32.mrf.mxu0
      %v874 = vadd.f32 %v617, %v873
      %v875 = vpop.f32.mrf.mxu0
      %v876 = vadd.f32 %v619, %v875
      %877 = vmatprep.mubr.f32.mxu0 0.0
      %878 = vmatmul.mubr.f32.gmra.mxu0 %v407
      %v879 = vpop.f32.mrf.mxu0
      %v880 = vadd.f32 %v623, %v879
      %v881 = vpop.f32.mrf.mxu0
      %v882 = vadd.f32 %v625, %v881
      %883 = vmatprep.mubr.f32.mxu0 0.0
      %884 = vmatmul.mubr.f32.gmra.mxu0 %v410
      %v885 = vpop.f32.mrf.mxu0
      %v886 = vadd.f32 %v629, %v885
      %v887 = vpop.f32.mrf.mxu0
      %v888 = vadd.f32 %v631, %v887
      %889 = vmatprep.mubr.f32.mxu0 0.0
      %890 = vmatmul.mubr.f32.gmra.mxu0 %v413
      %v891 = vpop.f32.mrf.mxu0
      %v892 = vadd.f32 %v635, %v891
      %v893 = vpop.f32.mrf.mxu0
      %v894 = vadd.f32 %v637, %v893
      %895 = vmatprep.mubr.f32.mxu0 0.0
      %896 = vmatmul.mubr.f32.gmra.mxu0 %v416
      %v897 = vpop.f32.mrf.mxu0
      %v898 = vadd.f32 %v641, %v897
      %v899 = vpop.f32.mrf.mxu0
      %v900 = vadd.f32 %v643, %v899
      %901 = vmatprep.mubr.f32.mxu0 0.0
      %902 = vmatmul.mubr.f32.gmra.mxu0 %v419
      %v903 = vpop.f32.mrf.mxu0
      %v904 = vadd.f32 %v647, %v903
      %v905 = vpop.f32.mrf.mxu0
      %v906 = vadd.f32 %v649, %v905
      %907 = vmatprep.mubr.f32.mxu0 0.0
      %908 = vmatmul.mubr.f32.gmra.mxu0 %v422
      %v909 = vpop.f32.mrf.mxu0
      %v910 = vadd.f32 %v653, %v909
      %v911 = vpop.f32.mrf.mxu0
      %v912 = vadd.f32 %v655, %v911
      %913 = vmatprep.mubr.f32.mxu0 0.0
      %914 = vmatmul.mubr.f32.gmra.mxu0 %v425
      %v915 = vpop.f32.mrf.mxu0
      %v916 = vadd.f32 %v659, %v915
      %v917 = vpop.f32.mrf.mxu0
      %v918 = vadd.f32 %v661, %v917
      %919 = vmatprep.mubr.f32.mxu0 0.0
      %920 = vmatmul.mubr.f32.gmra.mxu0 %v428
      %v921 = vpop.f32.mrf.mxu0
      %v922 = vadd.f32 %v665, %v921
      %v923 = vpop.f32.mrf.mxu0
      %v924 = vadd.f32 %v667, %v923
      %925 = vmatprep.mubr.f32.mxu0 0.0
      %926 = vmatmul.mubr.f32.gmra.mxu0 %v431
      %v927 = vpop.f32.mrf.mxu0
      %v928 = vadd.f32 %v671, %v927
      %v929 = vpop.f32.mrf.mxu0
      %v930 = vadd.f32 %v673, %v929
      %931 = vmatprep.mubr.f32.mxu0 0.0
      %932 = vmatmul.mubr.f32.gmra.mxu0 %v434
      %v933 = vpop.f32.mrf.mxu0
      %v934 = vadd.f32 %v677, %v933
      %v935 = vpop.f32.mrf.mxu0
      %v936 = vadd.f32 %v679, %v935
      %937 = vmatprep.mubr.f32.mxu0 0.0
      %938 = vmatmul.mubr.f32.gmra.mxu0 %v437
      %v939 = vpop.f32.mrf.mxu0
      %v940 = vadd.f32 %v683, %v939
      %v941 = vpop.f32.mrf.mxu0
      %v942 = vadd.f32 %v685, %v941
      %943 = vmatprep.mubr.f32.mxu0 0.0
      %944 = vmatmul.mubr.f32.gmra.mxu0 %v440
      %v945 = vpop.f32.mrf.mxu0
      %v946 = vadd.f32 %v689, %v945
      %v947 = vpop.f32.mrf.mxu0
      %v948 = vadd.f32 %v691, %v947
      %949 = vmatprep.mubr.f32.mxu0 0.0
      %950 = vmatmul.mubr.f32.gmra.mxu0 %v443
      %v951 = vpop.f32.mrf.mxu0
      %v952 = vadd.f32 %v695, %v951
      %v953 = vpop.f32.mrf.mxu0
      %v954 = vadd.f32 %v697, %v953
      %955 = vmatprep.mubr.f32.mxu0 0.0
      %956 = vmatmul.mubr.f32.gmra.mxu0 %v446
      %v957 = vpop.f32.mrf.mxu0
      %v958 = vadd.f32 %v701, %v957
      %v959 = vpop.f32.mrf.mxu0
      %v960 = vadd.f32 %v703, %v959
      %961 = vdwg.mxu0
      %v962 = vlaneseq
      %v963 = vand.u32 %v962, 127
      %v964 = vadd.s32 %v963, 128
      %v965 = vmul.f32 %v772, %v772
      %v966 = vmul.f32 %v774, %v774
      %v967 = vmul.f32 %v778, %v778
      %v968 = vmul.f32 %v780, %v780
      %v969 = vmul.f32 %v784, %v784
      %v970 = vmul.f32 %v786, %v786
      %v971 = vmul.f32 %v790, %v790
      %v972 = vmul.f32 %v792, %v792
      %v973 = vmul.f32 %v796, %v796
      %v974 = vmul.f32 %v798, %v798
      %v975 = vmul.f32 %v802, %v802
      %v976 = vmul.f32 %v804, %v804
      %v977 = vmul.f32 %v808, %v808
      %v978 = vmul.f32 %v810, %v810
      %v979 = vmul.f32 %v814, %v814
      %v980 = vmul.f32 %v816, %v816
      %v981 = vmul.f32 %v820, %v820
      %v982 = vmul.f32 %v822, %v822
      %v983 = vmul.f32 %v826, %v826
      %v984 = vmul.f32 %v828, %v828
      %v985 = vmul.f32 %v832, %v832
      %v986 = vmul.f32 %v834, %v834
      %v987 = vmul.f32 %v838, %v838
      %v988 = vmul.f32 %v840, %v840
      %v989 = vmul.f32 %v844, %v844
      %v990 = vmul.f32 %v846, %v846
      %v991 = vmul.f32 %v850, %v850
      %v992 = vmul.f32 %v852, %v852
      %v993 = vmul.f32 %v856, %v856
      %v994 = vmul.f32 %v858, %v858
      %v995 = vmul.f32 %v862, %v862
      %v996 = vmul.f32 %v864, %v864
      %v997 = vmul.f32 %v868, %v868
      %v998 = vmul.f32 %v870, %v870
      %v999 = vmul.f32 %v874, %v874
      %v1000 = vmul.f32 %v876, %v876
      %v1001 = vmul.f32 %v880, %v880
      %v1002 = vmul.f32 %v882, %v882
      %v1003 = vmul.f32 %v886, %v886
      %v1004 = vmul.f32 %v888, %v888
      %v1005 = vmul.f32 %v892, %v892
      %v1006 = vmul.f32 %v894, %v894
      %v1007 = vmul.f32 %v898, %v898
      %v1008 = vmul.f32 %v900, %v900
      %v1009 = vmul.f32 %v904, %v904
      %v1010 = vmul.f32 %v906, %v906
      %v1011 = vmul.f32 %v910, %v910
      %v1012 = vmul.f32 %v912, %v912
      %v1013 = vmul.f32 %v916, %v916
      %v1014 = vmul.f32 %v918, %v918
      %v1015 = vmul.f32 %v922, %v922
      %v1016 = vmul.f32 %v924, %v924
      %v1017 = vmul.f32 %v928, %v928
      %v1018 = vmul.f32 %v930, %v930
      %v1019 = vmul.f32 %v934, %v934
      %v1020 = vmul.f32 %v936, %v936
      %v1021 = vmul.f32 %v940, %v940
      %v1022 = vmul.f32 %v942, %v942
      %v1023 = vmul.f32 %v946, %v946
      %v1024 = vmul.f32 %v948, %v948
      %v1025 = vmul.f32 %v952, %v952
      %v1026 = vmul.f32 %v954, %v954
      %v1027 = vmul.f32 %v958, %v958
      %v1028 = vmul.f32 %v960, %v960
      %vm1029 = vcmp.ge.s32.totalorder %v963, 0
      %vm1030 = vcmp.ge.s32.totalorder %v964, 0
      %vm1031 = vcmp.lt.s32.totalorder %v963, 32
      %vm1032 = vcmp.lt.s32.totalorder %v964, 32
      %vm1033 = vmand %vm1029, %vm1031
      %vm1034 = vmand %vm1030, %vm1032
      %v1035 = vsel %vm1033, %v965, 0.0
      %v1036 = vsel %vm1034, %v966, 0.0
      %v1037 = vsel %vm1033, %v967, 0.0
      %v1038 = vsel %vm1034, %v968, 0.0
      %v1039 = vsel %vm1033, %v969, 0.0
      %v1040 = vsel %vm1034, %v970, 0.0
      %v1041 = vsel %vm1033, %v971, 0.0
      %v1042 = vsel %vm1034, %v972, 0.0
      %v1043 = vsel %vm1033, %v973, 0.0
      %v1044 = vsel %vm1034, %v974, 0.0
      %v1045 = vsel %vm1033, %v975, 0.0
      %v1046 = vsel %vm1034, %v976, 0.0
      %v1047 = vsel %vm1033, %v977, 0.0
      %v1048 = vsel %vm1034, %v978, 0.0
      %v1049 = vsel %vm1033, %v979, 0.0
      %v1050 = vsel %vm1034, %v980, 0.0
      %v1051 = vsel %vm1033, %v981, 0.0
      %v1052 = vsel %vm1034, %v982, 0.0
      %v1053 = vsel %vm1033, %v983, 0.0
      %v1054 = vsel %vm1034, %v984, 0.0
      %v1055 = vsel %vm1033, %v985, 0.0
      %v1056 = vsel %vm1034, %v986, 0.0
      %v1057 = vsel %vm1033, %v987, 0.0
      %v1058 = vsel %vm1034, %v988, 0.0
      %v1059 = vsel %vm1033, %v989, 0.0
      %v1060 = vsel %vm1034, %v990, 0.0
      %v1061 = vsel %vm1033, %v991, 0.0
      %v1062 = vsel %vm1034, %v992, 0.0
      %v1063 = vsel %vm1033, %v993, 0.0
      %v1064 = vsel %vm1034, %v994, 0.0
      %v1065 = vsel %vm1033, %v995, 0.0
      %v1066 = vsel %vm1034, %v996, 0.0
      %v1067 = vsel %vm1033, %v997, 0.0
      %v1068 = vsel %vm1034, %v998, 0.0
      %v1069 = vsel %vm1033, %v999, 0.0
      %v1070 = vsel %vm1034, %v1000, 0.0
      %v1071 = vsel %vm1033, %v1001, 0.0
      %v1072 = vsel %vm1034, %v1002, 0.0
      %v1073 = vsel %vm1033, %v1003, 0.0
      %v1074 = vsel %vm1034, %v1004, 0.0
      %v1075 = vsel %vm1033, %v1005, 0.0
      %v1076 = vsel %vm1034, %v1006, 0.0
      %v1077 = vsel %vm1033, %v1007, 0.0
      %v1078 = vsel %vm1034, %v1008, 0.0
      %v1079 = vsel %vm1033, %v1009, 0.0
      %v1080 = vsel %vm1034, %v1010, 0.0
      %v1081 = vsel %vm1033, %v1011, 0.0
      %v1082 = vsel %vm1034, %v1012, 0.0
      %v1083 = vsel %vm1033, %v1013, 0.0
      %v1084 = vsel %vm1034, %v1014, 0.0
      %v1085 = vsel %vm1033, %v1015, 0.0
      %v1086 = vsel %vm1034, %v1016, 0.0
      %v1087 = vsel %vm1033, %v1017, 0.0
      %v1088 = vsel %vm1034, %v1018, 0.0
      %v1089 = vsel %vm1033, %v1019, 0.0
      %v1090 = vsel %vm1034, %v1020, 0.0
      %v1091 = vsel %vm1033, %v1021, 0.0
      %v1092 = vsel %vm1034, %v1022, 0.0
      %v1093 = vsel %vm1033, %v1023, 0.0
      %v1094 = vsel %vm1034, %v1024, 0.0
      %v1095 = vsel %vm1033, %v1025, 0.0
      %v1096 = vsel %vm1034, %v1026, 0.0
      %v1097 = vsel %vm1033, %v1027, 0.0
      %v1098 = vsel %vm1034, %v1028, 0.0
      %v1099 = vadd.f32 %v1035, %v1036
      %1100 = vadd.xlane.f32.xlu0 %v1099
      %v1101 = vpop.xlane.xlu0 %1100
      %v1102 = vadd.f32 %v1037, %v1038
      %1103 = vadd.xlane.f32.xlu0 %v1102
      %v1104 = vpop.xlane.xlu0 %1103
      %v1105 = vadd.f32 %v1039, %v1040
      %1106 = vadd.xlane.f32.xlu0 %v1105
      %v1107 = vpop.xlane.xlu0 %1106
      %v1108 = vadd.f32 %v1041, %v1042
      %1109 = vadd.xlane.f32.xlu0 %v1108
      %v1110 = vpop.xlane.xlu0 %1109
      %v1111 = vadd.f32 %v1043, %v1044
      %1112 = vadd.xlane.f32.xlu0 %v1111
      %v1113 = vpop.xlane.xlu0 %1112
      %v1114 = vadd.f32 %v1045, %v1046
      %1115 = vadd.xlane.f32.xlu0 %v1114
      %v1116 = vpop.xlane.xlu0 %1115
      %v1117 = vadd.f32 %v1047, %v1048
      %1118 = vadd.xlane.f32.xlu0 %v1117
      %v1119 = vpop.xlane.xlu0 %1118
      %v1120 = vadd.f32 %v1049, %v1050
      %1121 = vadd.xlane.f32.xlu0 %v1120
      %v1122 = vpop.xlane.xlu0 %1121
      %v1123 = vadd.f32 %v1051, %v1052
      %1124 = vadd.xlane.f32.xlu0 %v1123
      %v1125 = vpop.xlane.xlu0 %1124
      %v1126 = vadd.f32 %v1053, %v1054
      %1127 = vadd.xlane.f32.xlu0 %v1126
      %v1128 = vpop.xlane.xlu0 %1127
      %v1129 = vadd.f32 %v1055, %v1056
      %1130 = vadd.xlane.f32.xlu0 %v1129
      %v1131 = vpop.xlane.xlu0 %1130
      %v1132 = vadd.f32 %v1057, %v1058
      %1133 = vadd.xlane.f32.xlu0 %v1132
      %v1134 = vpop.xlane.xlu0 %1133
      %v1135 = vadd.f32 %v1059, %v1060
      %1136 = vadd.xlane.f32.xlu0 %v1135
      %v1137 = vpop.xlane.xlu0 %1136
      %v1138 = vadd.f32 %v1061, %v1062
      %1139 = vadd.xlane.f32.xlu0 %v1138
      %v1140 = vpop.xlane.xlu0 %1139
      %v1141 = vadd.f32 %v1063, %v1064
      %1142 = vadd.xlane.f32.xlu0 %v1141
      %v1143 = vpop.xlane.xlu0 %1142
      %v1144 = vadd.f32 %v1065, %v1066
      %1145 = vadd.xlane.f32.xlu0 %v1144
      %v1146 = vpop.xlane.xlu0 %1145
      %v1147 = vadd.f32 %v1067, %v1068
      %1148 = vadd.xlane.f32.xlu0 %v1147
      %v1149 = vpop.xlane.xlu0 %1148
      %v1150 = vadd.f32 %v1069, %v1070
      %1151 = vadd.xlane.f32.xlu0 %v1150
      %v1152 = vpop.xlane.xlu0 %1151
      %v1153 = vadd.f32 %v1071, %v1072
      %1154 = vadd.xlane.f32.xlu0 %v1153
      %v1155 = vpop.xlane.xlu0 %1154
      %v1156 = vadd.f32 %v1073, %v1074
      %1157 = vadd.xlane.f32.xlu0 %v1156
      %v1158 = vpop.xlane.xlu0 %1157
      %v1159 = vadd.f32 %v1075, %v1076
      %1160 = vadd.xlane.f32.xlu0 %v1159
      %v1161 = vpop.xlane.xlu0 %1160
      %v1162 = vadd.f32 %v1077, %v1078
      %1163 = vadd.xlane.f32.xlu0 %v1162
      %v1164 = vpop.xlane.xlu0 %1163
      %v1165 = vadd.f32 %v1079, %v1080
      %1166 = vadd.xlane.f32.xlu0 %v1165
      %v1167 = vpop.xlane.xlu0 %1166
      %v1168 = vadd.f32 %v1081, %v1082
      %1169 = vadd.xlane.f32.xlu0 %v1168
      %v1170 = vpop.xlane.xlu0 %1169
      %v1171 = vadd.f32 %v1083, %v1084
      %1172 = vadd.xlane.f32.xlu0 %v1171
      %v1173 = vpop.xlane.xlu0 %1172
      %v1174 = vadd.f32 %v1085, %v1086
      %1175 = vadd.xlane.f32.xlu0 %v1174
      %v1176 = vpop.xlane.xlu0 %1175
      %v1177 = vadd.f32 %v1087, %v1088
      %1178 = vadd.xlane.f32.xlu0 %v1177
      %v1179 = vpop.xlane.xlu0 %1178
      %v1180 = vadd.f32 %v1089, %v1090
      %1181 = vadd.xlane.f32.xlu0 %v1180
      %v1182 = vpop.xlane.xlu0 %1181
      %v1183 = vadd.f32 %v1091, %v1092
      %1184 = vadd.xlane.f32.xlu0 %v1183
      %v1185 = vpop.xlane.xlu0 %1184
      %v1186 = vadd.f32 %v1093, %v1094
      %1187 = vadd.xlane.f32.xlu0 %v1186
      %v1188 = vpop.xlane.xlu0 %1187
      %v1189 = vadd.f32 %v1095, %v1096
      %1190 = vadd.xlane.f32.xlu0 %v1189
      %v1191 = vpop.xlane.xlu0 %1190
      %v1192 = vadd.f32 %v1097, %v1098
      %1193 = vadd.xlane.f32.xlu0 %v1192
      %v1194 = vpop.xlane.xlu0 %1193
      %v1195 = vmax.f32 %v1101, 1e-24
      %v1196 = vmax.f32 %v1104, 1e-24
      %v1197 = vmax.f32 %v1107, 1e-24
      %v1198 = vmax.f32 %v1110, 1e-24
      %v1199 = vmax.f32 %v1113, 1e-24
      %v1200 = vmax.f32 %v1116, 1e-24
      %v1201 = vmax.f32 %v1119, 1e-24
      %v1202 = vmax.f32 %v1122, 1e-24
      %v1203 = vmax.f32 %v1125, 1e-24
      %v1204 = vmax.f32 %v1128, 1e-24
      %v1205 = vmax.f32 %v1131, 1e-24
      %v1206 = vmax.f32 %v1134, 1e-24
      %v1207 = vmax.f32 %v1137, 1e-24
      %v1208 = vmax.f32 %v1140, 1e-24
      %v1209 = vmax.f32 %v1143, 1e-24
      %v1210 = vmax.f32 %v1146, 1e-24
      %v1211 = vmax.f32 %v1149, 1e-24
      %v1212 = vmax.f32 %v1152, 1e-24
      %v1213 = vmax.f32 %v1155, 1e-24
      %v1214 = vmax.f32 %v1158, 1e-24
      %v1215 = vmax.f32 %v1161, 1e-24
      %v1216 = vmax.f32 %v1164, 1e-24
      %v1217 = vmax.f32 %v1167, 1e-24
      %v1218 = vmax.f32 %v1170, 1e-24
      %v1219 = vmax.f32 %v1173, 1e-24
      %v1220 = vmax.f32 %v1176, 1e-24
      %v1221 = vmax.f32 %v1179, 1e-24
      %v1222 = vmax.f32 %v1182, 1e-24
      %v1223 = vmax.f32 %v1185, 1e-24
      %v1224 = vmax.f32 %v1188, 1e-24
      %v1225 = vmax.f32 %v1191, 1e-24
      %v1226 = vmax.f32 %v1194, 1e-24
      %v1227 = vrsqrt.pop %v1195
      %v1228 = vrsqrt.pop %v1196
      %v1229 = vrsqrt.pop %v1197
      %v1230 = vrsqrt.pop %v1198
      %v1231 = vrsqrt.pop %v1199
      %v1232 = vrsqrt.pop %v1200
      %v1233 = vrsqrt.pop %v1201
      %v1234 = vrsqrt.pop %v1202
      %v1235 = vrsqrt.pop %v1203
      %v1236 = vrsqrt.pop %v1204
      %v1237 = vrsqrt.pop %v1205
      %v1238 = vrsqrt.pop %v1206
      %v1239 = vrsqrt.pop %v1207
      %v1240 = vrsqrt.pop %v1208
      %v1241 = vrsqrt.pop %v1209
      %v1242 = vrsqrt.pop %v1210
      %v1243 = vrsqrt.pop %v1211
      %v1244 = vrsqrt.pop %v1212
      %v1245 = vrsqrt.pop %v1213
      %v1246 = vrsqrt.pop %v1214
      %v1247 = vrsqrt.pop %v1215
      %v1248 = vrsqrt.pop %v1216
      %v1249 = vrsqrt.pop %v1217
      %v1250 = vrsqrt.pop %v1218
      %v1251 = vrsqrt.pop %v1219
      %v1252 = vrsqrt.pop %v1220
      %v1253 = vrsqrt.pop %v1221
      %v1254 = vrsqrt.pop %v1222
      %v1255 = vrsqrt.pop %v1223
      %v1256 = vrsqrt.pop %v1224
      %v1257 = vrsqrt.pop %v1225
      %v1258 = vrsqrt.pop %v1226
      %v1259 = vsel %vm1033, %v1227, 1.0
      %v1260 = vsel %vm1034, %v1227, 1.0
      %v1261 = vsel %vm1033, %v1228, 1.0
      %v1262 = vsel %vm1034, %v1228, 1.0
      %v1263 = vsel %vm1033, %v1229, 1.0
      %v1264 = vsel %vm1034, %v1229, 1.0
      %v1265 = vsel %vm1033, %v1230, 1.0
      %v1266 = vsel %vm1034, %v1230, 1.0
      %v1267 = vsel %vm1033, %v1231, 1.0
      %v1268 = vsel %vm1034, %v1231, 1.0
      %v1269 = vsel %vm1033, %v1232, 1.0
      %v1270 = vsel %vm1034, %v1232, 1.0
      %v1271 = vsel %vm1033, %v1233, 1.0
      %v1272 = vsel %vm1034, %v1233, 1.0
      %v1273 = vsel %vm1033, %v1234, 1.0
      %v1274 = vsel %vm1034, %v1234, 1.0
      %v1275 = vsel %vm1033, %v1235, 1.0
      %v1276 = vsel %vm1034, %v1235, 1.0
      %v1277 = vsel %vm1033, %v1236, 1.0
      %v1278 = vsel %vm1034, %v1236, 1.0
      %v1279 = vsel %vm1033, %v1237, 1.0
      %v1280 = vsel %vm1034, %v1237, 1.0
      %v1281 = vsel %vm1033, %v1238, 1.0
      %v1282 = vsel %vm1034, %v1238, 1.0
      %v1283 = vsel %vm1033, %v1239, 1.0
      %v1284 = vsel %vm1034, %v1239, 1.0
      %v1285 = vsel %vm1033, %v1240, 1.0
      %v1286 = vsel %vm1034, %v1240, 1.0
      %v1287 = vsel %vm1033, %v1241, 1.0
      %v1288 = vsel %vm1034, %v1241, 1.0
      %v1289 = vsel %vm1033, %v1242, 1.0
      %v1290 = vsel %vm1034, %v1242, 1.0
      %v1291 = vsel %vm1033, %v1243, 1.0
      %v1292 = vsel %vm1034, %v1243, 1.0
      %v1293 = vsel %vm1033, %v1244, 1.0
      %v1294 = vsel %vm1034, %v1244, 1.0
      %v1295 = vsel %vm1033, %v1245, 1.0
      %v1296 = vsel %vm1034, %v1245, 1.0
      %v1297 = vsel %vm1033, %v1246, 1.0
      %v1298 = vsel %vm1034, %v1246, 1.0
      %v1299 = vsel %vm1033, %v1247, 1.0
      %v1300 = vsel %vm1034, %v1247, 1.0
      %v1301 = vsel %vm1033, %v1248, 1.0
      %v1302 = vsel %vm1034, %v1248, 1.0
      %v1303 = vsel %vm1033, %v1249, 1.0
      %v1304 = vsel %vm1034, %v1249, 1.0
      %v1305 = vsel %vm1033, %v1250, 1.0
      %v1306 = vsel %vm1034, %v1250, 1.0
      %v1307 = vsel %vm1033, %v1251, 1.0
      %v1308 = vsel %vm1034, %v1251, 1.0
      %v1309 = vsel %vm1033, %v1252, 1.0
      %v1310 = vsel %vm1034, %v1252, 1.0
      %v1311 = vsel %vm1033, %v1253, 1.0
      %v1312 = vsel %vm1034, %v1253, 1.0
      %v1313 = vsel %vm1033, %v1254, 1.0
      %v1314 = vsel %vm1034, %v1254, 1.0
      %v1315 = vsel %vm1033, %v1255, 1.0
      %v1316 = vsel %vm1034, %v1255, 1.0
      %v1317 = vsel %vm1033, %v1256, 1.0
      %v1318 = vsel %vm1034, %v1256, 1.0
      %v1319 = vsel %vm1033, %v1257, 1.0
      %v1320 = vsel %vm1034, %v1257, 1.0
      %v1321 = vsel %vm1033, %v1258, 1.0
      %v1322 = vsel %vm1034, %v1258, 1.0
      %vm1323 = vcmp.ge.s32.totalorder %v963, 32
      %vm1324 = vcmp.ge.s32.totalorder %v964, 32
      %vm1325 = vcmp.lt.s32.totalorder %v963, 64
      %vm1326 = vcmp.lt.s32.totalorder %v964, 64
      %vm1327 = vmand %vm1323, %vm1325
      %vm1328 = vmand %vm1324, %vm1326
      %v1329 = vsel %vm1327, %v965, 0.0
      %v1330 = vsel %vm1328, %v966, 0.0
      %v1331 = vsel %vm1327, %v967, 0.0
      %v1332 = vsel %vm1328, %v968, 0.0
      %v1333 = vsel %vm1327, %v969, 0.0
      %v1334 = vsel %vm1328, %v970, 0.0
      %v1335 = vsel %vm1327, %v971, 0.0
      %v1336 = vsel %vm1328, %v972, 0.0
      %v1337 = vsel %vm1327, %v973, 0.0
      %v1338 = vsel %vm1328, %v974, 0.0
      %v1339 = vsel %vm1327, %v975, 0.0
      %v1340 = vsel %vm1328, %v976, 0.0
      %v1341 = vsel %vm1327, %v977, 0.0
      %v1342 = vsel %vm1328, %v978, 0.0
      %v1343 = vsel %vm1327, %v979, 0.0
      %v1344 = vsel %vm1328, %v980, 0.0
      %v1345 = vsel %vm1327, %v981, 0.0
      %v1346 = vsel %vm1328, %v982, 0.0
      %v1347 = vsel %vm1327, %v983, 0.0
      %v1348 = vsel %vm1328, %v984, 0.0
      %v1349 = vsel %vm1327, %v985, 0.0
      %v1350 = vsel %vm1328, %v986, 0.0
      %v1351 = vsel %vm1327, %v987, 0.0
      %v1352 = vsel %vm1328, %v988, 0.0
      %v1353 = vsel %vm1327, %v989, 0.0
      %v1354 = vsel %vm1328, %v990, 0.0
      %v1355 = vsel %vm1327, %v991, 0.0
      %v1356 = vsel %vm1328, %v992, 0.0
      %v1357 = vsel %vm1327, %v993, 0.0
      %v1358 = vsel %vm1328, %v994, 0.0
      %v1359 = vsel %vm1327, %v995, 0.0
      %v1360 = vsel %vm1328, %v996, 0.0
      %v1361 = vsel %vm1327, %v997, 0.0
      %v1362 = vsel %vm1328, %v998, 0.0
      %v1363 = vsel %vm1327, %v999, 0.0
      %v1364 = vsel %vm1328, %v1000, 0.0
      %v1365 = vsel %vm1327, %v1001, 0.0
      %v1366 = vsel %vm1328, %v1002, 0.0
      %v1367 = vsel %vm1327, %v1003, 0.0
      %v1368 = vsel %vm1328, %v1004, 0.0
      %v1369 = vsel %vm1327, %v1005, 0.0
      %v1370 = vsel %vm1328, %v1006, 0.0
      %v1371 = vsel %vm1327, %v1007, 0.0
      %v1372 = vsel %vm1328, %v1008, 0.0
      %v1373 = vsel %vm1327, %v1009, 0.0
      %v1374 = vsel %vm1328, %v1010, 0.0
      %v1375 = vsel %vm1327, %v1011, 0.0
      %v1376 = vsel %vm1328, %v1012, 0.0
      %v1377 = vsel %vm1327, %v1013, 0.0
      %v1378 = vsel %vm1328, %v1014, 0.0
      %v1379 = vsel %vm1327, %v1015, 0.0
      %v1380 = vsel %vm1328, %v1016, 0.0
      %v1381 = vsel %vm1327, %v1017, 0.0
      %v1382 = vsel %vm1328, %v1018, 0.0
      %v1383 = vsel %vm1327, %v1019, 0.0
      %v1384 = vsel %vm1328, %v1020, 0.0
      %v1385 = vsel %vm1327, %v1021, 0.0
      %v1386 = vsel %vm1328, %v1022, 0.0
      %v1387 = vsel %vm1327, %v1023, 0.0
      %v1388 = vsel %vm1328, %v1024, 0.0
      %v1389 = vsel %vm1327, %v1025, 0.0
      %v1390 = vsel %vm1328, %v1026, 0.0
      %v1391 = vsel %vm1327, %v1027, 0.0
      %v1392 = vsel %vm1328, %v1028, 0.0
      %v1393 = vadd.f32 %v1329, %v1330
      %1394 = vadd.xlane.f32.xlu0 %v1393
      %v1395 = vpop.xlane.xlu0 %1394
      %v1396 = vadd.f32 %v1331, %v1332
      %1397 = vadd.xlane.f32.xlu0 %v1396
      %v1398 = vpop.xlane.xlu0 %1397
      %v1399 = vadd.f32 %v1333, %v1334
      %1400 = vadd.xlane.f32.xlu0 %v1399
      %v1401 = vpop.xlane.xlu0 %1400
      %v1402 = vadd.f32 %v1335, %v1336
      %1403 = vadd.xlane.f32.xlu0 %v1402
      %v1404 = vpop.xlane.xlu0 %1403
      %v1405 = vadd.f32 %v1337, %v1338
      %1406 = vadd.xlane.f32.xlu0 %v1405
      %v1407 = vpop.xlane.xlu0 %1406
      %v1408 = vadd.f32 %v1339, %v1340
      %1409 = vadd.xlane.f32.xlu0 %v1408
      %v1410 = vpop.xlane.xlu0 %1409
      %v1411 = vadd.f32 %v1341, %v1342
      %1412 = vadd.xlane.f32.xlu0 %v1411
      %v1413 = vpop.xlane.xlu0 %1412
      %v1414 = vadd.f32 %v1343, %v1344
      %1415 = vadd.xlane.f32.xlu0 %v1414
      %v1416 = vpop.xlane.xlu0 %1415
      %v1417 = vadd.f32 %v1345, %v1346
      %1418 = vadd.xlane.f32.xlu0 %v1417
      %v1419 = vpop.xlane.xlu0 %1418
      %v1420 = vadd.f32 %v1347, %v1348
      %1421 = vadd.xlane.f32.xlu0 %v1420
      %v1422 = vpop.xlane.xlu0 %1421
      %v1423 = vadd.f32 %v1349, %v1350
      %1424 = vadd.xlane.f32.xlu0 %v1423
      %v1425 = vpop.xlane.xlu0 %1424
      %v1426 = vadd.f32 %v1351, %v1352
      %1427 = vadd.xlane.f32.xlu0 %v1426
      %v1428 = vpop.xlane.xlu0 %1427
      %v1429 = vadd.f32 %v1353, %v1354
      %1430 = vadd.xlane.f32.xlu0 %v1429
      %v1431 = vpop.xlane.xlu0 %1430
      %v1432 = vadd.f32 %v1355, %v1356
      %1433 = vadd.xlane.f32.xlu0 %v1432
      %v1434 = vpop.xlane.xlu0 %1433
      %v1435 = vadd.f32 %v1357, %v1358
      %1436 = vadd.xlane.f32.xlu0 %v1435
      %v1437 = vpop.xlane.xlu0 %1436
      %v1438 = vadd.f32 %v1359, %v1360
      %1439 = vadd.xlane.f32.xlu0 %v1438
      %v1440 = vpop.xlane.xlu0 %1439
      %v1441 = vadd.f32 %v1361, %v1362
      %1442 = vadd.xlane.f32.xlu0 %v1441
      %v1443 = vpop.xlane.xlu0 %1442
      %v1444 = vadd.f32 %v1363, %v1364
      %1445 = vadd.xlane.f32.xlu0 %v1444
      %v1446 = vpop.xlane.xlu0 %1445
      %v1447 = vadd.f32 %v1365, %v1366
      %1448 = vadd.xlane.f32.xlu0 %v1447
      %v1449 = vpop.xlane.xlu0 %1448
      %v1450 = vadd.f32 %v1367, %v1368
      %1451 = vadd.xlane.f32.xlu0 %v1450
      %v1452 = vpop.xlane.xlu0 %1451
      %v1453 = vadd.f32 %v1369, %v1370
      %1454 = vadd.xlane.f32.xlu0 %v1453
      %v1455 = vpop.xlane.xlu0 %1454
      %v1456 = vadd.f32 %v1371, %v1372
      %1457 = vadd.xlane.f32.xlu0 %v1456
      %v1458 = vpop.xlane.xlu0 %1457
      %v1459 = vadd.f32 %v1373, %v1374
      %1460 = vadd.xlane.f32.xlu0 %v1459
      %v1461 = vpop.xlane.xlu0 %1460
      %v1462 = vadd.f32 %v1375, %v1376
      %1463 = vadd.xlane.f32.xlu0 %v1462
      %v1464 = vpop.xlane.xlu0 %1463
      %v1465 = vadd.f32 %v1377, %v1378
      %1466 = vadd.xlane.f32.xlu0 %v1465
      %v1467 = vpop.xlane.xlu0 %1466
      %v1468 = vadd.f32 %v1379, %v1380
      %1469 = vadd.xlane.f32.xlu0 %v1468
      %v1470 = vpop.xlane.xlu0 %1469
      %v1471 = vadd.f32 %v1381, %v1382
      %1472 = vadd.xlane.f32.xlu0 %v1471
      %v1473 = vpop.xlane.xlu0 %1472
      %v1474 = vadd.f32 %v1383, %v1384
      %1475 = vadd.xlane.f32.xlu0 %v1474
      %v1476 = vpop.xlane.xlu0 %1475
      %v1477 = vadd.f32 %v1385, %v1386
      %1478 = vadd.xlane.f32.xlu0 %v1477
      %v1479 = vpop.xlane.xlu0 %1478
      %v1480 = vadd.f32 %v1387, %v1388
      %1481 = vadd.xlane.f32.xlu0 %v1480
      %v1482 = vpop.xlane.xlu0 %1481
      %v1483 = vadd.f32 %v1389, %v1390
      %1484 = vadd.xlane.f32.xlu0 %v1483
      %v1485 = vpop.xlane.xlu0 %1484
      %v1486 = vadd.f32 %v1391, %v1392
      %1487 = vadd.xlane.f32.xlu0 %v1486
      %v1488 = vpop.xlane.xlu0 %1487
      %v1489 = vmax.f32 %v1395, 1e-24
      %v1490 = vmax.f32 %v1398, 1e-24
      %v1491 = vmax.f32 %v1401, 1e-24
      %v1492 = vmax.f32 %v1404, 1e-24
      %v1493 = vmax.f32 %v1407, 1e-24
      %v1494 = vmax.f32 %v1410, 1e-24
      %v1495 = vmax.f32 %v1413, 1e-24
      %v1496 = vmax.f32 %v1416, 1e-24
      %v1497 = vmax.f32 %v1419, 1e-24
      %v1498 = vmax.f32 %v1422, 1e-24
      %v1499 = vmax.f32 %v1425, 1e-24
      %v1500 = vmax.f32 %v1428, 1e-24
      %v1501 = vmax.f32 %v1431, 1e-24
      %v1502 = vmax.f32 %v1434, 1e-24
      %v1503 = vmax.f32 %v1437, 1e-24
      %v1504 = vmax.f32 %v1440, 1e-24
      %v1505 = vmax.f32 %v1443, 1e-24
      %v1506 = vmax.f32 %v1446, 1e-24
      %v1507 = vmax.f32 %v1449, 1e-24
      %v1508 = vmax.f32 %v1452, 1e-24
      %v1509 = vmax.f32 %v1455, 1e-24
      %v1510 = vmax.f32 %v1458, 1e-24
      %v1511 = vmax.f32 %v1461, 1e-24
      %v1512 = vmax.f32 %v1464, 1e-24
      %v1513 = vmax.f32 %v1467, 1e-24
      %v1514 = vmax.f32 %v1470, 1e-24
      %v1515 = vmax.f32 %v1473, 1e-24
      %v1516 = vmax.f32 %v1476, 1e-24
      %v1517 = vmax.f32 %v1479, 1e-24
      %v1518 = vmax.f32 %v1482, 1e-24
      %v1519 = vmax.f32 %v1485, 1e-24
      %v1520 = vmax.f32 %v1488, 1e-24
      %v1521 = vrsqrt.pop %v1489
      %v1522 = vrsqrt.pop %v1490
      %v1523 = vrsqrt.pop %v1491
      %v1524 = vrsqrt.pop %v1492
      %v1525 = vrsqrt.pop %v1493
      %v1526 = vrsqrt.pop %v1494
      %v1527 = vrsqrt.pop %v1495
      %v1528 = vrsqrt.pop %v1496
      %v1529 = vrsqrt.pop %v1497
      %v1530 = vrsqrt.pop %v1498
      %v1531 = vrsqrt.pop %v1499
      %v1532 = vrsqrt.pop %v1500
      %v1533 = vrsqrt.pop %v1501
      %v1534 = vrsqrt.pop %v1502
      %v1535 = vrsqrt.pop %v1503
      %v1536 = vrsqrt.pop %v1504
      %v1537 = vrsqrt.pop %v1505
      %v1538 = vrsqrt.pop %v1506
      %v1539 = vrsqrt.pop %v1507
      %v1540 = vrsqrt.pop %v1508
      %v1541 = vrsqrt.pop %v1509
      %v1542 = vrsqrt.pop %v1510
      %v1543 = vrsqrt.pop %v1511
      %v1544 = vrsqrt.pop %v1512
      %v1545 = vrsqrt.pop %v1513
      %v1546 = vrsqrt.pop %v1514
      %v1547 = vrsqrt.pop %v1515
      %v1548 = vrsqrt.pop %v1516
      %v1549 = vrsqrt.pop %v1517
      %v1550 = vrsqrt.pop %v1518
      %v1551 = vrsqrt.pop %v1519
      %v1552 = vrsqrt.pop %v1520
      %v1553 = vsel %vm1327, %v1521, %v1259
      %v1554 = vsel %vm1328, %v1521, %v1260
      %v1555 = vsel %vm1327, %v1522, %v1261
      %v1556 = vsel %vm1328, %v1522, %v1262
      %v1557 = vsel %vm1327, %v1523, %v1263
      %v1558 = vsel %vm1328, %v1523, %v1264
      %v1559 = vsel %vm1327, %v1524, %v1265
      %v1560 = vsel %vm1328, %v1524, %v1266
      %v1561 = vsel %vm1327, %v1525, %v1267
      %v1562 = vsel %vm1328, %v1525, %v1268
      %v1563 = vsel %vm1327, %v1526, %v1269
      %v1564 = vsel %vm1328, %v1526, %v1270
      %v1565 = vsel %vm1327, %v1527, %v1271
      %v1566 = vsel %vm1328, %v1527, %v1272
      %v1567 = vsel %vm1327, %v1528, %v1273
      %v1568 = vsel %vm1328, %v1528, %v1274
      %v1569 = vsel %vm1327, %v1529, %v1275
      %v1570 = vsel %vm1328, %v1529, %v1276
      %v1571 = vsel %vm1327, %v1530, %v1277
      %v1572 = vsel %vm1328, %v1530, %v1278
      %v1573 = vsel %vm1327, %v1531, %v1279
      %v1574 = vsel %vm1328, %v1531, %v1280
      %v1575 = vsel %vm1327, %v1532, %v1281
      %v1576 = vsel %vm1328, %v1532, %v1282
      %v1577 = vsel %vm1327, %v1533, %v1283
      %v1578 = vsel %vm1328, %v1533, %v1284
      %v1579 = vsel %vm1327, %v1534, %v1285
      %v1580 = vsel %vm1328, %v1534, %v1286
      %v1581 = vsel %vm1327, %v1535, %v1287
      %v1582 = vsel %vm1328, %v1535, %v1288
      %v1583 = vsel %vm1327, %v1536, %v1289
      %v1584 = vsel %vm1328, %v1536, %v1290
      %v1585 = vsel %vm1327, %v1537, %v1291
      %v1586 = vsel %vm1328, %v1537, %v1292
      %v1587 = vsel %vm1327, %v1538, %v1293
      %v1588 = vsel %vm1328, %v1538, %v1294
      %v1589 = vsel %vm1327, %v1539, %v1295
      %v1590 = vsel %vm1328, %v1539, %v1296
      %v1591 = vsel %vm1327, %v1540, %v1297
      %v1592 = vsel %vm1328, %v1540, %v1298
      %v1593 = vsel %vm1327, %v1541, %v1299
      %v1594 = vsel %vm1328, %v1541, %v1300
      %v1595 = vsel %vm1327, %v1542, %v1301
      %v1596 = vsel %vm1328, %v1542, %v1302
      %v1597 = vsel %vm1327, %v1543, %v1303
      %v1598 = vsel %vm1328, %v1543, %v1304
      %v1599 = vsel %vm1327, %v1544, %v1305
      %v1600 = vsel %vm1328, %v1544, %v1306
      %v1601 = vsel %vm1327, %v1545, %v1307
      %v1602 = vsel %vm1328, %v1545, %v1308
      %v1603 = vsel %vm1327, %v1546, %v1309
      %v1604 = vsel %vm1328, %v1546, %v1310
      %v1605 = vsel %vm1327, %v1547, %v1311
      %v1606 = vsel %vm1328, %v1547, %v1312
      %v1607 = vsel %vm1327, %v1548, %v1313
      %v1608 = vsel %vm1328, %v1548, %v1314
      %v1609 = vsel %vm1327, %v1549, %v1315
      %v1610 = vsel %vm1328, %v1549, %v1316
      %v1611 = vsel %vm1327, %v1550, %v1317
      %v1612 = vsel %vm1328, %v1550, %v1318
      %v1613 = vsel %vm1327, %v1551, %v1319
      %v1614 = vsel %vm1328, %v1551, %v1320
      %v1615 = vsel %vm1327, %v1552, %v1321
      %v1616 = vsel %vm1328, %v1552, %v1322
      %v1617 = vmul.f32 %v772, %v1553
      %v1618 = vmul.f32 %v774, %v1554
      %v1619 = vmul.f32 %v778, %v1555
      %v1620 = vmul.f32 %v780, %v1556
      %v1621 = vmul.f32 %v784, %v1557
      %v1622 = vmul.f32 %v786, %v1558
      %v1623 = vmul.f32 %v790, %v1559
      %v1624 = vmul.f32 %v792, %v1560
      %v1625 = vmul.f32 %v796, %v1561
      %v1626 = vmul.f32 %v798, %v1562
      %v1627 = vmul.f32 %v802, %v1563
      %v1628 = vmul.f32 %v804, %v1564
      %v1629 = vmul.f32 %v808, %v1565
      %v1630 = vmul.f32 %v810, %v1566
      %v1631 = vmul.f32 %v814, %v1567
      %v1632 = vmul.f32 %v816, %v1568
      %v1633 = vmul.f32 %v820, %v1569
      %v1634 = vmul.f32 %v822, %v1570
      %v1635 = vmul.f32 %v826, %v1571
      %v1636 = vmul.f32 %v828, %v1572
      %v1637 = vmul.f32 %v832, %v1573
      %v1638 = vmul.f32 %v834, %v1574
      %v1639 = vmul.f32 %v838, %v1575
      %v1640 = vmul.f32 %v840, %v1576
      %v1641 = vmul.f32 %v844, %v1577
      %v1642 = vmul.f32 %v846, %v1578
      %v1643 = vmul.f32 %v850, %v1579
      %v1644 = vmul.f32 %v852, %v1580
      %v1645 = vmul.f32 %v856, %v1581
      %v1646 = vmul.f32 %v858, %v1582
      %v1647 = vmul.f32 %v862, %v1583
      %v1648 = vmul.f32 %v864, %v1584
      %v1649 = vmul.f32 %v868, %v1585
      %v1650 = vmul.f32 %v870, %v1586
      %v1651 = vmul.f32 %v874, %v1587
      %v1652 = vmul.f32 %v876, %v1588
      %v1653 = vmul.f32 %v880, %v1589
      %v1654 = vmul.f32 %v882, %v1590
      %v1655 = vmul.f32 %v886, %v1591
      %v1656 = vmul.f32 %v888, %v1592
      %v1657 = vmul.f32 %v892, %v1593
      %v1658 = vmul.f32 %v894, %v1594
      %v1659 = vmul.f32 %v898, %v1595
      %v1660 = vmul.f32 %v900, %v1596
      %v1661 = vmul.f32 %v904, %v1597
      %v1662 = vmul.f32 %v906, %v1598
      %v1663 = vmul.f32 %v910, %v1599
      %v1664 = vmul.f32 %v912, %v1600
      %v1665 = vmul.f32 %v916, %v1601
      %v1666 = vmul.f32 %v918, %v1602
      %v1667 = vmul.f32 %v922, %v1603
      %v1668 = vmul.f32 %v924, %v1604
      %v1669 = vmul.f32 %v928, %v1605
      %v1670 = vmul.f32 %v930, %v1606
      %v1671 = vmul.f32 %v934, %v1607
      %v1672 = vmul.f32 %v936, %v1608
      %v1673 = vmul.f32 %v940, %v1609
      %v1674 = vmul.f32 %v942, %v1610
      %v1675 = vmul.f32 %v946, %v1611
      %v1676 = vmul.f32 %v948, %v1612
      %v1677 = vmul.f32 %v952, %v1613
      %v1678 = vmul.f32 %v954, %v1614
      %v1679 = vmul.f32 %v958, %v1615
      %v1680 = vmul.f32 %v960, %v1616
      %1681 = vst [vmem:[%s170] sm:$0xff] %v1617
      %1682 = vst [vmem:[%s170 + $0x8] sm:$0xff] %v1618
      %1683 = vst [vmem:[%s170 + $0x10] sm:$0xff] %v1619
      %1684 = vst [vmem:[%s170 + $0x18] sm:$0xff] %v1620
      %1685 = vst [vmem:[%s170 + $0x20] sm:$0xff] %v1621
      %1686 = vst [vmem:[%s170 + $0x28] sm:$0xff] %v1622
      %1687 = vst [vmem:[%s170 + $0x30] sm:$0xff] %v1623
      %1688 = vst [vmem:[%s170 + $0x38] sm:$0xff] %v1624
      %1689 = vst [vmem:[%s170 + $0x40] sm:$0xff] %v1625
      %1690 = vst [vmem:[%s170 + $0x48] sm:$0xff] %v1626
      %1691 = vst [vmem:[%s170 + $0x50] sm:$0xff] %v1627
      %1692 = vst [vmem:[%s170 + $0x58] sm:$0xff] %v1628
      %1693 = vst [vmem:[%s170 + $0x60] sm:$0xff] %v1629
      %1694 = vst [vmem:[%s170 + $0x68] sm:$0xff] %v1630
      %1695 = vst [vmem:[%s170 + $0x70] sm:$0xff] %v1631
      %1696 = vst [vmem:[%s170 + $0x78] sm:$0xff] %v1632
      %1697 = vst [vmem:[%s170 + $0x80] sm:$0xff] %v1633
      %1698 = vst [vmem:[%s170 + $0x88] sm:$0xff] %v1634
      %1699 = vst [vmem:[%s170 + $0x90] sm:$0xff] %v1635
      %1700 = vst [vmem:[%s170 + $0x98] sm:$0xff] %v1636
      %1701 = vst [vmem:[%s170 + $0xa0] sm:$0xff] %v1637
      %1702 = vst [vmem:[%s170 + $0xa8] sm:$0xff] %v1638
      %1703 = vst [vmem:[%s170 + $0xb0] sm:$0xff] %v1639
      %1704 = vst [vmem:[%s170 + $0xb8] sm:$0xff] %v1640
      %1705 = vst [vmem:[%s170 + $0xc0] sm:$0xff] %v1641
      %1706 = vst [vmem:[%s170 + $0xc8] sm:$0xff] %v1642
      %1707 = vst [vmem:[%s170 + $0xd0] sm:$0xff] %v1643
      %1708 = vst [vmem:[%s170 + $0xd8] sm:$0xff] %v1644
      %1709 = vst [vmem:[%s170 + $0xe0] sm:$0xff] %v1645
      %1710 = vst [vmem:[%s170 + $0xe8] sm:$0xff] %v1646
      %1711 = vst [vmem:[%s170 + $0xf0] sm:$0xff] %v1647
      %1712 = vst [vmem:[%s170 + $0xf8] sm:$0xff] %v1648
      %1713 = vst [vmem:[%s170 + $0x100] sm:$0xff] %v1649
      %1714 = vst [vmem:[%s170 + $0x108] sm:$0xff] %v1650
      %1715 = vst [vmem:[%s170 + $0x110] sm:$0xff] %v1651
      %1716 = vst [vmem:[%s170 + $0x118] sm:$0xff] %v1652
      %1717 = vst [vmem:[%s170 + $0x120] sm:$0xff] %v1653
      %1718 = vst [vmem:[%s170 + $0x128] sm:$0xff] %v1654
      %1719 = vst [vmem:[%s170 + $0x130] sm:$0xff] %v1655
      %1720 = vst [vmem:[%s170 + $0x138] sm:$0xff] %v1656
      %1721 = vst [vmem:[%s170 + $0x140] sm:$0xff] %v1657
      %1722 = vst [vmem:[%s170 + $0x148] sm:$0xff] %v1658
      %1723 = vst [vmem:[%s170 + $0x150] sm:$0xff] %v1659
      %1724 = vst [vmem:[%s170 + $0x158] sm:$0xff] %v1660
      %1725 = vst [vmem:[%s170 + $0x160] sm:$0xff] %v1661
      %1726 = vst [vmem:[%s170 + $0x168] sm:$0xff] %v1662
      %1727 = vst [vmem:[%s170 + $0x170] sm:$0xff] %v1663
      %1728 = vst [vmem:[%s170 + $0x178] sm:$0xff] %v1664
      %1729 = vst [vmem:[%s170 + $0x180] sm:$0xff] %v1665
      %1730 = vst [vmem:[%s170 + $0x188] sm:$0xff] %v1666
      %1731 = vst [vmem:[%s170 + $0x190] sm:$0xff] %v1667
      %1732 = vst [vmem:[%s170 + $0x198] sm:$0xff] %v1668
      %1733 = vst [vmem:[%s170 + $0x1a0] sm:$0xff] %v1669
      %1734 = vst [vmem:[%s170 + $0x1a8] sm:$0xff] %v1670
      %1735 = vst [vmem:[%s170 + $0x1b0] sm:$0xff] %v1671
      %1736 = vst [vmem:[%s170 + $0x1b8] sm:$0xff] %v1672
      %1737 = vst [vmem:[%s170 + $0x1c0] sm:$0xff] %v1673
      %1738 = vst [vmem:[%s170 + $0x1c8] sm:$0xff] %v1674
      %1739 = vst [vmem:[%s170 + $0x1d0] sm:$0xff] %v1675
      %1740 = vst [vmem:[%s170 + $0x1d8] sm:$0xff] %v1676
      %1741 = vst [vmem:[%s170 + $0x1e0] sm:$0xff] %v1677
      %1742 = vst [vmem:[%s170 + $0x1e8] sm:$0xff] %v1678
      %1743 = vst [vmem:[%s170 + $0x1f0] sm:$0xff] %v1679
      %1744 = vst [vmem:[%s170 + $0x1f8] sm:$0xff] %v1680
      %p1745 = scmp.lt.s32.totalorder %s14, 1
      %s1746 = scalar_select %p1745, %s14, 1
      %s1747 = smul.addr %s1746, 64
      %s1748 = smul.addr %s1747, 8
      %s1749 = scalar_lea.vmem %s3, %s1748
      // Predicated region
      $region33: #{_forward.3} parent=31 // pred_check
        %p1750 = pneg %p100
      $region34: #{_forward.3} parent=31 // pred_check_branch
        %1752 = sbr.rel (%p1750) target = $region36
      $region35: #{_forward.3} parent=31 // pred_region
        _
      $region36: #{_forward.3} parent=31 // pred_fallthru
        _
    $region32: #{_forward.3} parent=5 // pred_fallthru
      _
    %p1753 = scmp.le.s32.totalorder 2, %s9
    // Predicated region
    $region37: #{_forward.3} parent=5 // pred_check
      %p1754 = pneg %p1753
    $region38: #{_forward.3} parent=5 // pred_check_branch
      %1756 = sbr.rel (%p1754) target = $region40
    $region39: #{_forward.3} parent=5 // pred_region
      %s1757 = ssub.s32 %s9, 2
      // Predicated region
      $region41: #{_forward.3} parent=39 // pred_check
        %p1758 = pneg %p106
      $region42: #{_forward.3} parent=39 // pred_check_branch
        %1760 = sbr.rel (%p1758) target = $region44
      $region43: #{_forward.3} parent=39 // pred_region
        %p1761 = scmp.lt.s32.totalorder %s15, 1
        %s1762 = scalar_select %p1761, %s15, 1
        %s1763 = smul.addr %s1762, 64
        %s1764 = smul.addr %s1763, 8
        %s1765 = scalar_lea.vmem %s3, %s1764
      $region44: #{_forward.3} parent=39 // pred_fallthru
        _
    $region40: #{_forward.3} parent=5 // pred_fallthru
      _
  $region6: #{_forward.3} parent=0 // loop_footer
    %s13 = sadd.s32 1, %s9
  $region7: #{_forward.3} parent=0 // loop_footer_branch
    %8 = sbr.rel target = $region3
  $region8: #{_forward.3} parent=0 // loop_exit
    _

</llo_original>
